<compile_context>
chip_gen: v7x
topology: tpu7x:2x2x1
jax: 0.10.0
libtpu: 0.0.40
codegen_flags: <defaults>
</compile_context>

<pallas_src>
import numpy as np

import jax
import jax.numpy as jnp
from jax.experimental import pallas as pl
from jax.experimental.pallas import tpu as pltpu


LANE = 128
SUBLANE = 8

_VMEM_LIMIT_CACHE = None


def _vmem_limit():
    """Scoped-VMEM request: ~75% of per-core physical VMEM (48 MiB on v7x,
    96 MiB on v5e/v6e), leaving headroom for compiler-internal scratch."""
    global _VMEM_LIMIT_CACHE
    if _VMEM_LIMIT_CACHE is None:
        try:
            cap = int(pltpu.get_tpu_info().vmem_capacity_bytes)
        except Exception:
            cap = 64 * 1024 * 1024          # conservative (v7x per-TC VMEM)
        _VMEM_LIMIT_CACHE = min(cap * 3 // 4, 100 * 1024 * 1024)
    return _VMEM_LIMIT_CACHE


def _round_up(x, m):
    return (x + m - 1) // m * m


def _resident_spec(block_shape, index_map, single_buffer):
    """Spec for a block whose index never changes (weights/bias): request a
    single buffer instead of the default double buffer."""
    if single_buffer:
        return pl.BlockSpec(block_shape, index_map,
                            pipeline_mode=pl.Buffered(1))
    return pl.BlockSpec(block_shape, index_map)


def _maybe_single_buffered(run):
    """Run with single-buffered resident weights; fall back to the default
    double-buffered pipeline if this Pallas build rejects pl.Buffered(1)."""
    try:
        return run(True)
    except Exception:
        return run(False)


# ----------------------------------------------------------------------------
# Kernel 1: hoisted input projection  xW = x @ W_ih + (b_ih + b_hh)
# ----------------------------------------------------------------------------
def _proj_kernel(x_ref, w_ref, b_ref, out_ref):
    out_ref[...] = (jnp.dot(x_ref[...], w_ref[...],
                            preferred_element_type=jnp.float32)
                    + b_ref[...]).astype(out_ref.dtype)


def input_projection(x_flat, w_ih_p, bias_p, *, out_dtype, tile_m=512):
    """(M, E) @ (E, 4Hp) + bias -> (M, 4Hp) out_dtype, tiled over rows."""
    M, E = x_flat.shape
    G4 = w_ih_p.shape[1]
    if M <= tile_m:
        Mp = _round_up(M, SUBLANE)
        tm = Mp
    else:
        Mp = _round_up(M, tile_m)
        tm = tile_m
    if Mp != M:
        x_flat = jnp.pad(x_flat, ((0, Mp - M), (0, 0)))

    def run(single_buffer):
        return pl.pallas_call(
            _proj_kernel,
            out_shape=jax.ShapeDtypeStruct((Mp, G4), out_dtype),
            grid_spec=pltpu.PrefetchScalarGridSpec(
                num_scalar_prefetch=0,
                grid=(Mp // tm,),
                in_specs=[
                    pl.BlockSpec((tm, E), lambda i: (i, 0)),
                    _resident_spec((E, G4), lambda i: (0, 0), single_buffer),
                    _resident_spec((1, G4), lambda i: (0, 0), single_buffer),
                ],
                out_specs=pl.BlockSpec((tm, G4), lambda i: (i, 0)),
            ),
            compiler_params=pltpu.CompilerParams(
                dimension_semantics=("parallel",),
                vmem_limit_bytes=_vmem_limit()),
        )(x_flat, w_ih_p, bias_p)

    out = _maybe_single_buffered(run)
    return out[:M]


# ----------------------------------------------------------------------------
# Kernel 2: LSTM recurrence (PyTorch gate order i, f, g, o).
# Grid = (batch_split "parallel", T-chunks "arbitrary"); h/c persist in VMEM
# scratch across chunks, carried as fori_loop values within a chunk; only a
# per-chunk slab of xW / output is VMEM resident (streamed, double-buffered).
# ----------------------------------------------------------------------------
def _lstm_kernel(xw_ref, whh_ref, out_ref, h_scr, c_scr):
    Tc = xw_ref.shape[0]
    Hp = h_scr.shape[1]

    @pl.when(pl.program_id(1) == 0)        # first T-chunk of this batch split
    def _():
        h_scr[...] = jnp.zeros_like(h_scr)
        c_scr[...] = jnp.zeros_like(c_scr)

    # TODO(synk): stage W_hh on the MXU across steps with
    # pltpu.matmul_push_rhs / matmul_acc_lhs (same RHS every step).
    def step(t, carry):
        h_prev, c_prev = carry                           # (Bh, Hp) f32 vregs
        gates = xw_ref[t].astype(jnp.float32) + jnp.dot(
            h_prev.astype(whh_ref.dtype), whh_ref[...],
            preferred_element_type=jnp.float32)          # (Bh, 4Hp) f32
        # Hp is a multiple of 128 -> all gate slices are lane-aligned.
        i_g = jax.nn.sigmoid(gates[:, 0 * Hp:1 * Hp])
        f_g = jax.nn.sigmoid(gates[:, 1 * Hp:2 * Hp])
        g_g = jnp.tanh(gates[:, 2 * Hp:3 * Hp])
        o_g = jax.nn.sigmoid(gates[:, 3 * Hp:4 * Hp])
        c_new = f_g * c_prev + i_g * g_g
        h_new = o_g * jnp.tanh(c_new)
        out_ref[t] = h_new.astype(out_ref.dtype)
        return (h_new, c_new)

    carry0 = (h_scr[...], c_scr[...])
    h_fin, c_fin = jax.lax.fori_loop(0, Tc, step, carry0,
                                     unroll=(Tc if Tc <= 8 else 4))
    # Write state back to scratch only at the chunk boundary.
    h_scr[...] = h_fin
    c_scr[...] = c_fin


def lstm_recurrence(xw_tm, w_hh_p, *, chunk, out_dtype):
    """xw_tm: (Tp, Bp, 4Hp) precomputed x@W_ih + bias -> (Tp, Bp, Hp)."""
    Tp, Bp, G4 = xw_tm.shape
    Hp = G4 // 4
    # Split the batch across the two v7x TensorCores when it is big enough
    # (independent recurrences); a no-op (grid axis of size 1) otherwise.
    n_bsplit = 2 if (Bp >= 16 and Bp % (2 * SUBLANE) == 0) else 1
    Bh = Bp // n_bsplit

    def run(single_buffer):
        return pl.pallas_call(
            _lstm_kernel,
            out_shape=jax.ShapeDtypeStruct((Tp, Bp, Hp), out_dtype),
            grid_spec=pltpu.PrefetchScalarGridSpec(
                num_scalar_prefetch=0,
                grid=(n_bsplit, Tp // chunk),
                in_specs=[
                    pl.BlockSpec((chunk, Bh, G4), lambda b, t: (t, b, 0)),
                    _resident_spec((Hp, G4), lambda b, t: (0, 0),
                                   single_buffer),
                ],
                out_specs=pl.BlockSpec((chunk, Bh, Hp), lambda b, t: (t, b, 0)),
                scratch_shapes=[
                    pltpu.VMEM((Bh, Hp), jnp.float32),   # h state (persists)
                    pltpu.VMEM((Bh, Hp), jnp.float32),   # c state (persists)
                ],
            ),
            compiler_params=pltpu.CompilerParams(
                dimension_semantics=("parallel", "arbitrary"),
                vmem_limit_bytes=_vmem_limit()),
        )(xw_tm, w_hh_p)

    return _maybe_single_buffered(run)


# ----------------------------------------------------------------------------
# Kernel 3: Linear (Hp -> Vp) + LogSoftmax over packed rows, N-tiled.
# TODO(synk): for very large vocab, tile Vp as an inner "arbitrary" axis with
# an online logsumexp instead of keeping the whole (Hp, Vp) weight resident.
# ----------------------------------------------------------------------------
def _head_kernel(h_ref, w_ref, b_ref, out_ref):
    logits = (jnp.dot(h_ref[...], w_ref[...],
                      preferred_element_type=jnp.float32) + b_ref[...])
    m = jnp.max(logits, axis=1, keepdims=True)
    z = logits - m
    # exp kept in f32 (v5e has no bf16 EUP); bf16 exp with f32 sum is a minor
    # possible win on v6e/v7x if the head turns out EUP-bound.
    lse = jnp.log(jnp.sum(jnp.exp(z), axis=1, keepdims=True))
    out_ref[...] = z - lse


def head_forward(h_packed, w_lin_p, b_lin_p, *, tile_n=None):
    """h_packed: (N, Hp) -> log-probs (N, Vp) f32."""
    N, Hp = h_packed.shape
    Vp = w_lin_p.shape[1]
    if tile_n is None:
        # Keep the double-buffered (tn, Vp) f32 output tile around <= 4 MiB:
        # large row tiles for small vocab (v5e/v6e), smaller when Vp is big.
        tile_n = min(1024, max(SUBLANE,
                               ((2 * 1024 * 1024) // (Vp * 4))
                               // SUBLANE * SUBLANE))
    if N <= tile_n:
        Np = _round_up(N, SUBLANE)
        tn = Np
    else:
        Np = _round_up(N, tile_n)
        tn = tile_n
    if Np != N:
        h_packed = jnp.pad(h_packed, ((0, Np - N), (0, 0)))

    def run(single_buffer):
        return pl.pallas_call(
            _head_kernel,
            out_shape=jax.ShapeDtypeStruct((Np, Vp), jnp.float32),
            grid_spec=pltpu.PrefetchScalarGridSpec(
                num_scalar_prefetch=0,
                grid=(Np // tn,),
                in_specs=[
                    pl.BlockSpec((tn, Hp), lambda i: (i, 0)),
                    _resident_spec((Hp, Vp), lambda i: (0, 0), single_buffer),
                    _resident_spec((1, Vp), lambda i: (0, 0), single_buffer),
                ],
                out_specs=pl.BlockSpec((tn, Vp), lambda i: (i, 0)),
            ),
            compiler_params=pltpu.CompilerParams(
                dimension_semantics=("parallel",),
                vmem_limit_bytes=_vmem_limit()),
        )(h_packed, w_lin_p, b_lin_p)

    out = _maybe_single_buffered(run)
    return out[:N]


# ----------------------------------------------------------------------------
# Parameter padding (exact): H -> Hp = mult of 128 per gate, V -> Vp.
# Padded hidden units get zero weights/bias and stay exactly 0; padded vocab
# columns get a -1e30 bias so they do not contribute to the softmax.
# ----------------------------------------------------------------------------
def _pad_gate_cols(w, H, Hp):
    """(..., 4H) -> (..., 4Hp), each gate block padded to Hp lanes."""
    pads = [(0, 0)] * (w.ndim - 1) + [(0, Hp - H)]
    return jnp.concatenate(
        [jnp.pad(w[..., k * H:(k + 1) * H], pads) for k in range(4)], axis=-1)


def pad_params(params, matmul_dtype):
    E = params["w_ih_t"].shape[0]
    H = params["w_hh_t"].shape[0]
    V = params["w_lin_t"].shape[1]
    Hp = _round_up(H, LANE)
    Vp = _round_up(V, LANE)
    w_ih = _pad_gate_cols(params["w_ih_t"], H, Hp)                   # (E, 4Hp)
    w_hh = jnp.pad(_pad_gate_cols(params["w_hh_t"], H, Hp),
                   ((0, Hp - H), (0, 0)))                            # (Hp, 4Hp)
    bias = _pad_gate_cols(params["bias"], H, Hp)                     # (1, 4Hp)
    w_lin = jnp.pad(params["w_lin_t"], ((0, Hp - H), (0, Vp - V)))   # (Hp, Vp)
    b_lin = jnp.pad(params["b_lin"], ((0, 0), (0, Vp - V)),
                    constant_values=-1e30)                           # (1, Vp)
    return {
        "embedding": params["embedding"],
        "w_ih_t": w_ih.astype(matmul_dtype),
        "w_hh_t": w_hh.astype(matmul_dtype),
        "bias": bias.astype(jnp.float32),
        "w_lin_t": w_lin.astype(matmul_dtype),
        "b_lin": b_lin.astype(jnp.float32),
        "E": E, "H": H, "V": V, "Hp": Hp, "Vp": Vp,
    }


# ----------------------------------------------------------------------------
# Glue: embedding lookup (time-major), pack_padded_sequence ordering.
# ----------------------------------------------------------------------------
def pack_indices(lengths, row_stride):
    """Flat (t * row_stride + b) indices matching torch pack_padded_sequence
    order (batch_first, lengths sorted descending)."""
    idx = []
    for t in range(max(lengths)):
        for b, ln in enumerate(lengths):
            if ln > t:
                idx.append(t * row_stride + b)
    return np.asarray(idx, dtype=np.int32)


def decoder_lstm_forward(params, visual_features, titles, lengths,
                         matmul_dtype=jnp.float32, lstm_chunk=8):
    """Pallas implementation of DecoderLSTM.forward.

    visual_features: (B, E) f32, titles: (B, Tt) int32, lengths: python list
    (sorted descending, each <= Tt + 1).  Returns (sum(lengths), V) f32.

    NOTE: T and N = sum(lengths) determine the traced shapes; callers should
    bucket lengths / sequence length to a small set of sizes so the kernels
    are not recompiled for every new lengths combination.
    """
    B, E = visual_features.shape
    Tt = titles.shape[1]
    T = Tt + 1
    Bp = _round_up(B, SUBLANE)

    p = pad_params(params, matmul_dtype)
    Hp = p["Hp"]
    G4 = 4 * Hp

    # Time-axis chunking for the recurrence kernel (padded steps are exact:
    # their outputs are never gathered).
    if T <= lstm_chunk:
        Tc, Tp = T, T
    else:
        Tc = lstm_chunk
        Tp = _round_up(T, Tc)

    # Embedding lookup built directly time-major (no activation transpose),
    # visual feature prepended at t = 0, batch/time zero-padded.
    titles_p = jnp.pad(titles, ((0, Bp - B), (0, 0)))
    visual_p = jnp.pad(visual_features, ((0, Bp - B), (0, 0)))
    emb_tm = jnp.take(p["embedding"], titles_p.T, axis=0)          # (Tt, Bp, E)
    x_tm = jnp.concatenate([visual_p[None, :, :], emb_tm], 0)      # (T, Bp, E)
    if Tp != T:
        x_tm = jnp.pad(x_tm, ((0, Tp - T), (0, 0), (0, 0)))
    x_flat = x_tm.reshape(Tp * Bp, E).astype(matmul_dtype)

    # Kernel 1: hoisted input projection (one big matmul, not T tiny ones).
    xw = input_projection(x_flat, p["w_ih_t"], p["bias"],
                          out_dtype=matmul_dtype)
    xw_tm = xw.reshape(Tp, Bp, G4)

    # Kernel 2: serial LSTM recurrence, T-chunked, streamed xW/output.
    h_all = lstm_recurrence(xw_tm, p["w_hh_t"], chunk=Tc,
                            out_dtype=matmul_dtype)                # (Tp,Bp,Hp)

    # pack_padded_sequence ordering (time-major over valid (t, b) rows).
    # TODO(synk): fuse this row gather into the head kernel (scalar-prefetched
    # per-timestep offsets + memory_space=pl.ANY) to drop the extra HBM pass.
    idx = jnp.asarray(pack_indices(lengths, Bp))
    h_packed = jnp.take(h_all.reshape(Tp * Bp, Hp), idx, axis=0)

    # Kernel 3: Linear + LogSoftmax, N-tiled; drop padded vocab columns.
    out = head_forward(h_packed, p["w_lin_t"], p["b_lin"])
    return out[:, :p["V"]]


# ----------------------------------------------------------------------------
# Pure-JAX reference (unpadded, f32) for verification.
# ----------------------------------------------------------------------------
def reference_forward(params, visual_features, titles, lengths):
    B = visual_features.shape[0]
    emb = jnp.take(params["embedding"], titles, axis=0)
    x = jnp.concatenate([visual_features[:, None, :], emb], 1)
    x_tbe = jnp.transpose(x, (1, 0, 2)).astype(jnp.float32)
    H = params["w_hh_t"].shape[0]

    def step(carry, x_t):
        h, c = carry
        gates = x_t @ params["w_ih_t"] + h @ params["w_hh_t"] + params["bias"][0]
        i = jax.nn.sigmoid(gates[:, 0 * H:1 * H])
        f = jax.nn.sigmoid(gates[:, 1 * H:2 * H])
        g = jnp.tanh(gates[:, 2 * H:3 * H])
        o = jax.nn.sigmoid(gates[:, 3 * H:4 * H])
        c = f * c + i * g
        h = o * jnp.tanh(c)
        return (h, c), h

    init = (jnp.zeros((B, H), jnp.float32), jnp.zeros((B, H), jnp.float32))
    _, h_all = jax.lax.scan(step, init, x_tbe)
    T = h_all.shape[0]
    idx = jnp.asarray(pack_indices(lengths, B))
    h_packed = jnp.take(h_all.reshape(T * B, H), idx, axis=0)
    logits = h_packed @ params["w_lin_t"] + params["b_lin"][0]
    return jax.nn.log_softmax(logits, axis=1)


# ----------------------------------------------------------------------------
if __name__ == "__main__":
    # small shapes consistent with the module; batch=16 also exercises the
    # multi-chunk time axis and the batch-split grid axis of kernel 2.
    embedding_size = 32
    hidden_size = 32
    vocab_size = 64
    batch = 16
    title_len = 8                       # titles: (B, 8) -> T = 9 after concat
    lengths = [9, 9, 8, 8, 7, 7, 6, 6, 5, 5, 4, 4, 3, 3, 2, 2]   # sorted desc

    key = jax.random.PRNGKey(0)
    ks = jax.random.split(key, 9)
    H, E, V = hidden_size, embedding_size, vocab_size

    # deterministic synthetic parameters (PyTorch LSTM gate order i,f,g,o)
    params = {
        "embedding": jax.random.normal(ks[0], (V, E), jnp.float32) * 0.1,
        "w_ih_t":    jax.random.normal(ks[1], (E, 4 * H), jnp.float32) * 0.1,
        "w_hh_t":    jax.random.normal(ks[2], (H, 4 * H), jnp.float32) * 0.1,
        "bias":      (jax.random.normal(ks[3], (1, 4 * H), jnp.float32) * 0.1
                      + jax.random.normal(ks[4], (1, 4 * H), jnp.float32) * 0.1),
        "w_lin_t":   jax.random.normal(ks[5], (H, V), jnp.float32) * 0.1,
        "b_lin":     jax.random.normal(ks[6], (1, V), jnp.float32) * 0.1,
    }

    visual_features = jax.random.normal(ks[7], (batch, E), jnp.float32)
    titles = jax.random.randint(ks[8], (batch, title_len), 0, V, jnp.int32)

    ref = reference_forward(params, visual_features, titles, lengths)

    # f32 path: strict check (also validates the chunked scratch h/c carry).
    out = decoder_lstm_forward(params, visual_features, titles, lengths)
    out = jax.block_until_ready(out)
    assert out.shape == (sum(lengths), V), out.shape
    np.testing.assert_allclose(np.asarray(out), np.asarray(ref),
                               rtol=1e-4, atol=1e-4)

    # bf16 production path (bf16 matmul operands AND bf16 storage of the
    # hoisted projection / hidden states per the perf review); f32 state,
    # accumulation and log-softmax.
    out_bf16 = decoder_lstm_forward(params, visual_features, titles, lengths,
                                    matmul_dtype=jnp.bfloat16)
    out_bf16 = jax.block_until_ready(out_bf16)
    np.testing.assert_allclose(np.asarray(out_bf16), np.asarray(ref),
                               rtol=5e-2, atol=5e-2)

    print("KERNEL_OK")
</pallas_src>

<mosaic_0001>
module attributes {stable_mosaic.version = 11 : i64} {
  func.func @_proj_kernel(%arg0: i32, %arg1: memref<256x32xf32, #tpu.memory_space<vmem>>, %arg2: memref<32x512xf32, #tpu.memory_space<vmem>>, %arg3: memref<1x512xf32, #tpu.memory_space<vmem>>, %arg4: memref<256x512xf32, #tpu.memory_space<vmem>>) attributes {dimension_semantics = [#tpu.dimension_semantics<parallel>], iteration_bounds = array<i64: 1>, scalar_prefetch = 0 : i64, scratch_operands = 0 : i64, tpu.core_type = #tpu.core_type<tc>, window_params = [{transform_indices = @transform_0, window_bounds = array<i64: 256, 32>}, {pipeline_mode = #tpu.pipeline_mode<synchronous>, transform_indices = @transform_1, window_bounds = array<i64: 32, 512>}, {pipeline_mode = #tpu.pipeline_mode<synchronous>, transform_indices = @transform_2, window_bounds = array<i64: 1, 512>}, {transform_indices = @transform_3, window_bounds = array<i64: 256, 512>}]} {
    %c0 = arith.constant 0 : index
    %c0_0 = arith.constant 0 : index
    %0 = vector.load %arg1[%c0, %c0_0] : memref<256x32xf32, #tpu.memory_space<vmem>>, vector<256x32xf32>
    %c0_1 = arith.constant 0 : index
    %c0_2 = arith.constant 0 : index
    %1 = vector.load %arg2[%c0_1, %c0_2] : memref<32x512xf32, #tpu.memory_space<vmem>>, vector<32x512xf32>
    %cst = arith.constant dense<0.000000e+00> : vector<256x512xf32>
    %2 = tpu.matmul %0, %1, %cst {dimension_numbers = #tpu.dot_dimension_numbers<[1], [0], [0], [1], [0, 0, 1, 1], [], []>} : vector<256x32xf32>, vector<32x512xf32>, vector<256x512xf32> -> vector<256x512xf32>
    %c0_3 = arith.constant 0 : index
    %c0_4 = arith.constant 0 : index
    %3 = vector.load %arg3[%c0_3, %c0_4] : memref<1x512xf32, #tpu.memory_space<vmem>>, vector<1x512xf32>
    %4 = vector.broadcast %3 : vector<1x512xf32> to vector<256x512xf32>
    %5 = arith.addf %2, %4 : vector<256x512xf32>
    %c0_5 = arith.constant 0 : index
    %c0_6 = arith.constant 0 : index
    %6 = vector.load %arg4[%c0_5, %c0_6] : memref<256x512xf32, #tpu.memory_space<vmem>>, vector<256x512xf32>
    tpu.vector_store %arg4[%c0_5, %c0_6], %5 {strides = array<i32>} : memref<256x512xf32, #tpu.memory_space<vmem>>, vector<256x512xf32>,
    return
  }
  func.func @transform_0(%arg0: i32) -> (i32, i32) {
    %c0_i32 = arith.constant 0 : i32
    %c0_i32_0 = arith.constant 0 : i32
    return %arg0, %c0_i32 : i32, i32
  }
  func.func @transform_1(%arg0: i32) -> (i32, i32) {
    %c0_i32 = arith.constant 0 : i32
    %c0_i32_0 = arith.constant 0 : i32
    %c0_i32_1 = arith.constant 0 : i32
    return %c0_i32, %c0_i32_0 : i32, i32
  }
  func.func @transform_2(%arg0: i32) -> (i32, i32) {
    %c0_i32 = arith.constant 0 : i32
    %c0_i32_0 = arith.constant 0 : i32
    %c0_i32_1 = arith.constant 0 : i32
    return %c0_i32, %c0_i32_0 : i32, i32
  }
  func.func @transform_3(%arg0: i32) -> (i32, i32) {
    %c0_i32 = arith.constant 0 : i32
    %c0_i32_0 = arith.constant 0 : i32
    return %arg0, %c0_i32 : i32, i32
  }
}

module attributes {stable_mosaic.version = 11 : i64} {
  func.func @_proj_kernel(%arg0: i32, %arg1: memref<256x32xf32, #tpu.memory_space<vmem>>, %arg2: memref<32x512xf32, #tpu.memory_space<vmem>>, %arg3: memref<1x512xf32, #tpu.memory_space<vmem>>, %arg4: memref<256x512xf32, #tpu.memory_space<vmem>>) attributes {dimension_semantics = [#tpu.dimension_semantics<parallel>], iteration_bounds = array<i64: 1>, scalar_prefetch = 0 : i64, scratch_operands = 0 : i64, tpu.core_type = #tpu.core_type<tc>, window_params = [{transform_indices = @transform_0, window_bounds = array<i64: 256, 32>}, {pipeline_mode = #tpu.pipeline_mode<synchronous>, transform_indices = @transform_1, window_bounds = array<i64: 32, 512>}, {pipeline_mode = #tpu.pipeline_mode<synchronous>, transform_indices = @transform_2, window_bounds = array<i64: 1, 512>}, {transform_indices = @transform_3, window_bounds = array<i64: 256, 512>}]} {
    %c0 = arith.constant 0 : index
    %c0_0 = arith.constant 0 : index
    %0 = vector.load %arg1[%c0, %c0_0] : memref<256x32xf32, #tpu.memory_space<vmem>>, vector<256x32xf32>
    %c0_1 = arith.constant 0 : index
    %c0_2 = arith.constant 0 : index
    %1 = vector.load %arg2[%c0_1, %c0_2] : memref<32x512xf32, #tpu.memory_space<vmem>>, vector<32x512xf32>
    %cst = arith.constant dense<0.000000e+00> : vector<256x512xf32>
    %2 = tpu.matmul %0, %1, %cst {dimension_numbers = #tpu.dot_dimension_numbers<[1], [0], [0], [1], [0, 0, 1, 1], [], []>} : vector<256x32xf32>, vector<32x512xf32>, vector<256x512xf32> -> vector<256x512xf32>
    %c0_3 = arith.constant 0 : index
    %c0_4 = arith.constant 0 : index
    %3 = vector.load %arg3[%c0_3, %c0_4] : memref<1x512xf32, #tpu.memory_space<vmem>>, vector<1x512xf32>
    %4 = vector.broadcast %3 : vector<1x512xf32> to vector<256x512xf32>
    %5 = arith.addf %2, %4 : vector<256x512xf32>
    %c0_5 = arith.constant 0 : index
    %c0_6 = arith.constant 0 : index
    %6 = vector.load %arg4[%c0_5, %c0_6] : memref<256x512xf32, #tpu.memory_space<vmem>>, vector<256x512xf32>
    tpu.vector_store %arg4[%c0_5, %c0_6], %5 {strides = array<i32>} : memref<256x512xf32, #tpu.memory_space<vmem>>, vector<256x512xf32>,
    return
  }
  func.func @transform_0(%arg0: i32) -> (i32, i32) {
    %c0_i32 = arith.constant 0 : i32
    %c0_i32_0 = arith.constant 0 : i32
    return %arg0, %c0_i32 : i32, i32
  }
  func.func @transform_1(%arg0: i32) -> (i32, i32) {
    %c0_i32 = arith.constant 0 : i32
    %c0_i32_0 = arith.constant 0 : i32
    %c0_i32_1 = arith.constant 0 : i32
    return %c0_i32, %c0_i32_0 : i32, i32
  }
  func.func @transform_2(%arg0: i32) -> (i32, i32) {
    %c0_i32 = arith.constant 0 : i32
    %c0_i32_0 = arith.constant 0 : i32
    %c0_i32_1 = arith.constant 0 : i32
    return %c0_i32, %c0_i32_0 : i32, i32
  }
  func.func @transform_3(%arg0: i32) -> (i32, i32) {
    %c0_i32 = arith.constant 0 : i32
    %c0_i32_0 = arith.constant 0 : i32
    return %arg0, %c0_i32 : i32, i32
  }
}

</mosaic_0001>

<llo_original>
// kernel: tpu_custom_call.1
$region0: #{tpu_custom_call.1}
  #allocation0 [shape = 'u32[]', space=smem, size = 0x4, offset = 0x4, fixed_abs, tag = 'smem constant byte address 0x4 - core index']
  #allocation1 [shape = 'u32[144,128]{1,0:T(1,128)}', space=vmem, size = 0x12000, scoped, tag = 'internal scratch']
  %s0 = inlined_call_operand.vmem [shape: f32[256,32], index: 0, kind: input, shape index: {}]
  %s1 = inlined_call_operand.vmem [shape: f32[32,512], index: 1, kind: input, shape index: {}]
  %s2 = inlined_call_operand.vmem [shape: f32[1,512], index: 2, kind: input, shape index: {}]
  %s3 = inlined_call_operand.hbm [shape: f32[256,512], index: 3, kind: output, shape index: {}]
  %s4 = sld [smem:[#allocation0]]
  $region22: #{tpu_custom_call.1} parent=0
    _
  %s6 = ssub.s32 1, %s4
  %s7 = scalar_select 0, %s6, %s4
  $region1: #{tpu_custom_call.1} parent=0
    #allocation2 [shape = 'u8[524288]{0}', space=vmem, size = 0x80000, scoped, tag = 'output window, operand 0, single buffered']
    #allocation3 [shape = 's32[1]{0}', space=sflag, size = 0x4, scoped, tag = 'scoped memory for tpu_custom_call.1']
    %8 = vsyncpa [#allocation3], 0
    // Predicated region
    $region2: #{tpu_custom_call.1} parent=1 // pred_check
      _
    $region3: #{tpu_custom_call.1} parent=1 // pred_check_branch
      %10 = sbr.rel (0) target = $region5
    $region4: #{tpu_custom_call.1} parent=1 // pred_region
      _
    $region5: #{tpu_custom_call.1} parent=1 // pred_fallthru
      _
    // Predicated region
    $region6: #{tpu_custom_call.1} parent=1 // pred_check
      _
    $region7: #{tpu_custom_call.1} parent=1 // pred_check_branch
      %12 = sbr.rel (0) target = $region9
    $region8: #{tpu_custom_call.1} parent=1 // pred_region
      _
    $region9: #{tpu_custom_call.1} parent=1 // pred_fallthru
      _
    // Predicated region
    $region10: #{tpu_custom_call.1} parent=1 // pred_check
      _
    $region11: #{tpu_custom_call.1} parent=1 // pred_check_branch
      %14 = sbr.rel (0) target = $region13
    $region12: #{tpu_custom_call.1} parent=1 // pred_region
      _
    $region13: #{tpu_custom_call.1} parent=1 // pred_fallthru
      _
    %v15 = vld [vmem:[%s0] sm:$0xff]
    %v16 = vld [vmem:[%s0 + $0x8] sm:$0xff]
    %v17 = vld [vmem:[%s0 + $0x10] sm:$0xff]
    %v18 = vld [vmem:[%s0 + $0x18] sm:$0xff]
    %v19 = vld [vmem:[%s0 + $0x20] sm:$0xff]
    %v20 = vld [vmem:[%s0 + $0x28] sm:$0xff]
    %v21 = vld [vmem:[%s0 + $0x30] sm:$0xff]
    %v22 = vld [vmem:[%s0 + $0x38] sm:$0xff]
    %v23 = vld [vmem:[%s0 + $0x40] sm:$0xff]
    %v24 = vld [vmem:[%s0 + $0x48] sm:$0xff]
    %v25 = vld [vmem:[%s0 + $0x50] sm:$0xff]
    %v26 = vld [vmem:[%s0 + $0x58] sm:$0xff]
    %v27 = vld [vmem:[%s0 + $0x60] sm:$0xff]
    %v28 = vld [vmem:[%s0 + $0x68] sm:$0xff]
    %v29 = vld [vmem:[%s0 + $0x70] sm:$0xff]
    %v30 = vld [vmem:[%s0 + $0x78] sm:$0xff]
    %v31 = vld [vmem:[%s0 + $0x80] sm:$0xff]
    %v32 = vld [vmem:[%s0 + $0x88] sm:$0xff]
    %v33 = vld [vmem:[%s0 + $0x90] sm:$0xff]
    %v34 = vld [vmem:[%s0 + $0x98] sm:$0xff]
    %v35 = vld [vmem:[%s0 + $0xa0] sm:$0xff]
    %v36 = vld [vmem:[%s0 + $0xa8] sm:$0xff]
    %v37 = vld [vmem:[%s0 + $0xb0] sm:$0xff]
    %v38 = vld [vmem:[%s0 + $0xb8] sm:$0xff]
    %v39 = vld [vmem:[%s0 + $0xc0] sm:$0xff]
    %v40 = vld [vmem:[%s0 + $0xc8] sm:$0xff]
    %v41 = vld [vmem:[%s0 + $0xd0] sm:$0xff]
    %v42 = vld [vmem:[%s0 + $0xd8] sm:$0xff]
    %v43 = vld [vmem:[%s0 + $0xe0] sm:$0xff]
    %v44 = vld [vmem:[%s0 + $0xe8] sm:$0xff]
    %v45 = vld [vmem:[%s0 + $0xf0] sm:$0xff]
    %v46 = vld [vmem:[%s0 + $0xf8] sm:$0xff]
    %v47 = vld [vmem:[%s1] sm:$0xff]
    %v48 = vld [vmem:[%s1 + $0x8] sm:$0xff]
    %v49 = vld [vmem:[%s1 + $0x10] sm:$0xff]
    %v50 = vld [vmem:[%s1 + $0x18] sm:$0xff]
    %v51 = vld [vmem:[%s1 + $0x20] sm:$0xff]
    %v52 = vld [vmem:[%s1 + $0x28] sm:$0xff]
    %v53 = vld [vmem:[%s1 + $0x30] sm:$0xff]
    %v54 = vld [vmem:[%s1 + $0x38] sm:$0xff]
    %v55 = vld [vmem:[%s1 + $0x40] sm:$0xff]
    %v56 = vld [vmem:[%s1 + $0x48] sm:$0xff]
    %v57 = vld [vmem:[%s1 + $0x50] sm:$0xff]
    %v58 = vld [vmem:[%s1 + $0x58] sm:$0xff]
    %v59 = vld [vmem:[%s1 + $0x60] sm:$0xff]
    %v60 = vld [vmem:[%s1 + $0x68] sm:$0xff]
    %v61 = vld [vmem:[%s1 + $0x70] sm:$0xff]
    %v62 = vld [vmem:[%s1 + $0x78] sm:$0xff]
    %v63 = vld [vmem:[%s2] sm:$0xf]
    %v65 = vlaneseq
    %v66 = vshrl.u32 %v65, 7
    %v67 = vsub.s32 0, %v66
    %v68 = vrot.slane %v63, %v67
    %v69 = vlaneseq
    %v70 = vshrl.u32 %v69, 7
    %v71 = vsub.s32 1, %v70
    %v72 = vrot.slane %v63, %v71
    %v73 = vlaneseq
    %v74 = vshrl.u32 %v73, 7
    %v75 = vsub.s32 2, %v74
    %v76 = vrot.slane %v63, %v75
    %v77 = vlaneseq
    %v78 = vshrl.u32 %v77, 7
    %v79 = vsub.s32 3, %v78
    %v80 = vrot.slane %v63, %v79
    %vm85 = vcmask 261120
    %v87 = vsel %vm85, %v15, 0
    %v90 = vsel %vm85, %v16, 0
    %v93 = vsel %vm85, %v17, 0
    %v96 = vsel %vm85, %v18, 0
    %v99 = vsel %vm85, %v19, 0
    %v102 = vsel %vm85, %v20, 0
    %v105 = vsel %vm85, %v21, 0
    %v108 = vsel %vm85, %v22, 0
    %v111 = vsel %vm85, %v23, 0
    %v114 = vsel %vm85, %v24, 0
    %v117 = vsel %vm85, %v25, 0
    %v120 = vsel %vm85, %v26, 0
    %v123 = vsel %vm85, %v27, 0
    %v126 = vsel %vm85, %v28, 0
    %v129 = vsel %vm85, %v29, 0
    %v132 = vsel %vm85, %v30, 0
    %v135 = vsel %vm85, %v31, 0
    %v138 = vsel %vm85, %v32, 0
    %v141 = vsel %vm85, %v33, 0
    %v144 = vsel %vm85, %v34, 0
    %v147 = vsel %vm85, %v35, 0
    %v150 = vsel %vm85, %v36, 0
    %v153 = vsel %vm85, %v37, 0
    %v156 = vsel %vm85, %v38, 0
    %v159 = vsel %vm85, %v39, 0
    %v162 = vsel %vm85, %v40, 0
    %v165 = vsel %vm85, %v41, 0
    %v168 = vsel %vm85, %v42, 0
    %v171 = vsel %vm85, %v43, 0
    %v174 = vsel %vm85, %v44, 0
    %v177 = vsel %vm85, %v45, 0
    %v180 = vsel %vm85, %v46, 0
    %182 = vmatprep.subr.mxu0 %v48
    %183 = vmatpush1.msra.mxu0 %v47
    %184 = vmatprep.subr.mxu0 %v52
    %185 = vmatpush1.msra.mxu0 %v51
    %186 = vmatprep.subr.mxu0 %v56
    %187 = vmatpush1.msra.mxu0 %v55
    %188 = vmatprep.subr.mxu0 %v60
    %189 = vmatpush1.msra.mxu0 %v59
    %190 = vmatprep.subr.mxu0 0.0
    %191 = vmatpush1.msra.mxu0 0.0
    %192 = vmatprep.subr.mxu0 0.0
    %193 = vmatpush1.msra.mxu0 0.0
    %194 = vmatprep.subr.mxu0 0.0
    %195 = vmatpush1.msra.mxu0 0.0
    %196 = vmatprep.subr.mxu0 0.0
    %197 = vmatpush1.msra.mxu0 0.0
    %198 = vmatprep.subr.mxu0 0.0
    %199 = vmatpush1.msra.mxu0 0.0
    %200 = vmatprep.subr.mxu0 0.0
    %201 = vmatpush1.msra.mxu0 0.0
    %202 = vmatprep.subr.mxu0 0.0
    %203 = vmatpush1.msra.mxu0 0.0
    %204 = vmatprep.subr.mxu0 0.0
    %205 = vmatpush1.msra.mxu0 0.0
    %206 = vmatprep.subr.mxu0 0.0
    %207 = vmatpush1.msra.mxu0 0.0
    %208 = vmatprep.subr.mxu0 0.0
    %209 = vmatpush1.msra.mxu0 0.0
    %210 = vmatprep.subr.mxu0 0.0
    %211 = vmatpush1.msra.mxu0 0.0
    %212 = vmatprep.subr.mxu0 0.0
    %213 = vmatpush1.msra.mxu0 0.0
    %214 = vmatprep.subr.mxu0 0.0
    %215 = vmatpush1.msra.mxu0 0.0
    %216 = vmatprep.subr.mxu0 0.0
    %217 = vmatpush1.msra.mxu0 0.0
    %218 = vmatprep.subr.mxu0 0.0
    %219 = vmatpush1.msra.mxu0 0.0
    %220 = vmatprep.subr.mxu0 0.0
    %221 = vmatpush1.msra.mxu0 0.0
    %222 = vmatprep.subr.mxu0 0.0
    %223 = vmatpush1.msra.mxu0 0.0
    %224 = vmatprep.subr.mxu0 0.0
    %225 = vmatpush1.msra.mxu0 0.0
    %226 = vmatprep.subr.mxu0 0.0
    %227 = vmatpush1.msra.mxu0 0.0
    %228 = vmatprep.subr.mxu0 0.0
    %229 = vmatpush1.msra.mxu0 0.0
    %230 = vmatprep.subr.mxu0 0.0
    %231 = vmatpush1.msra.mxu0 0.0
    %232 = vmatprep.subr.mxu0 0.0
    %233 = vmatpush1.msra.mxu0 0.0
    %234 = vmatprep.subr.mxu0 0.0
    %235 = vmatpush1.msra.mxu0 0.0
    %236 = vmatprep.subr.mxu0 0.0
    %237 = vmatpush1.msra.mxu0 0.0
    %238 = vmatprep.subr.mxu0 0.0
    %239 = vmatpush1.msra.mxu0 0.0
    %240 = vmatprep.subr.mxu0 0.0
    %241 = vmatpush1.msra.mxu0 0.0
    %242 = vmatprep.subr.mxu0 0.0
    %243 = vmatpush1.msra.mxu0 0.0
    %244 = vmatprep.subr.mxu0 0.0
    %245 = vmatpush1.msra.mxu0 0.0
    %246 = vmatprep.mubr.f32.mxu0 0.0
    %247 = vmatmul.mubr.f32.gmra.mrb[0].mxu0 %v87
    %v248 = vpop.f32.mrb[0].mxu0
    %v249 = vadd.f32 %v68, %v248
    %v250 = vpop.f32.mrb[0].mxu0
    %v251 = vadd.f32 %v72, %v250
    %252 = vmatprep.mubr.f32.mxu0 0.0
    %253 = vmatmul.mubr.f32.gmra.mrb[0].mxu0 %v90
    %v254 = vpop.f32.mrb[0].mxu0
    %v255 = vadd.f32 %v68, %v254
    %v256 = vpop.f32.mrb[0].mxu0
    %v257 = vadd.f32 %v72, %v256
    %258 = vmatprep.mubr.f32.mxu0 0.0
    %259 = vmatmul.mubr.f32.gmra.mrb[0].mxu0 %v93
    %v260 = vpop.f32.mrb[0].mxu0
    %v261 = vadd.f32 %v68, %v260
    %v262 = vpop.f32.mrb[0].mxu0
    %v263 = vadd.f32 %v72, %v262
    %264 = vmatprep.mubr.f32.mxu0 0.0
    %265 = vmatmul.mubr.f32.gmra.mrb[0].mxu0 %v96
    %v266 = vpop.f32.mrb[0].mxu0
    %v267 = vadd.f32 %v68, %v266
    %v268 = vpop.f32.mrb[0].mxu0
    %v269 = vadd.f32 %v72, %v268
    %270 = vmatprep.mubr.f32.mxu0 0.0
    %271 = vmatmul.mubr.f32.gmra.mrb[0].mxu0 %v99
    %v272 = vpop.f32.mrb[0].mxu0
    %v273 = vadd.f32 %v68, %v272
    %v274 = vpop.f32.mrb[0].mxu0
    %v275 = vadd.f32 %v72, %v274
    %276 = vmatprep.mubr.f32.mxu0 0.0
    %277 = vmatmul.mubr.f32.gmra.mrb[0].mxu0 %v102
    %v278 = vpop.f32.mrb[0].mxu0
    %v279 = vadd.f32 %v68, %v278
    %v280 = vpop.f32.mrb[0].mxu0
    %v281 = vadd.f32 %v72, %v280
    %282 = vmatprep.mubr.f32.mxu0 0.0
    %283 = vmatmul.mubr.f32.gmra.mrb[0].mxu0 %v105
    %v284 = vpop.f32.mrb[0].mxu0
    %v285 = vadd.f32 %v68, %v284
    %v286 = vpop.f32.mrb[0].mxu0
    %v287 = vadd.f32 %v72, %v286
    %288 = vmatprep.mubr.f32.mxu0 0.0
    %289 = vmatmul.mubr.f32.gmra.mrb[0].mxu0 %v108
    %v290 = vpop.f32.mrb[0].mxu0
    %v291 = vadd.f32 %v68, %v290
    %v292 = vpop.f32.mrb[0].mxu0
    %v293 = vadd.f32 %v72, %v292
    %294 = vmatprep.mubr.f32.mxu0 0.0
    %295 = vmatmul.mubr.f32.gmra.mrb[0].mxu0 %v111
    %v296 = vpop.f32.mrb[0].mxu0
    %v297 = vadd.f32 %v68, %v296
    %v298 = vpop.f32.mrb[0].mxu0
    %v299 = vadd.f32 %v72, %v298
    %300 = vmatprep.mubr.f32.mxu0 0.0
    %301 = vmatmul.mubr.f32.gmra.mrb[0].mxu0 %v114
    %v302 = vpop.f32.mrb[0].mxu0
    %v303 = vadd.f32 %v68, %v302
    %v304 = vpop.f32.mrb[0].mxu0
    %v305 = vadd.f32 %v72, %v304
    %306 = vmatprep.mubr.f32.mxu0 0.0
    %307 = vmatmul.mubr.f32.gmra.mrb[0].mxu0 %v117
    %v308 = vpop.f32.mrb[0].mxu0
    %v309 = vadd.f32 %v68, %v308
    %v310 = vpop.f32.mrb[0].mxu0
    %v311 = vadd.f32 %v72, %v310
    %312 = vmatprep.mubr.f32.mxu0 0.0
    %313 = vmatmul.mubr.f32.gmra.mrb[0].mxu0 %v120
    %v314 = vpop.f32.mrb[0].mxu0
    %v315 = vadd.f32 %v68, %v314
    %v316 = vpop.f32.mrb[0].mxu0
    %v317 = vadd.f32 %v72, %v316
    %318 = vmatprep.mubr.f32.mxu0 0.0
    %319 = vmatmul.mubr.f32.gmra.mrb[0].mxu0 %v123
    %v320 = vpop.f32.mrb[0].mxu0
    %v321 = vadd.f32 %v68, %v320
    %v322 = vpop.f32.mrb[0].mxu0
    %v323 = vadd.f32 %v72, %v322
    %324 = vmatprep.mubr.f32.mxu0 0.0
    %325 = vmatmul.mubr.f32.gmra.mrb[0].mxu0 %v126
    %v326 = vpop.f32.mrb[0].mxu0
    %v327 = vadd.f32 %v68, %v326
    %v328 = vpop.f32.mrb[0].mxu0
    %v329 = vadd.f32 %v72, %v328
    %330 = vmatprep.mubr.f32.mxu0 0.0
    %331 = vmatmul.mubr.f32.gmra.mrb[0].mxu0 %v129
    %v332 = vpop.f32.mrb[0].mxu0
    %v333 = vadd.f32 %v68, %v332
    %v334 = vpop.f32.mrb[0].mxu0
    %v335 = vadd.f32 %v72, %v334
    %336 = vmatprep.mubr.f32.mxu0 0.0
    %337 = vmatmul.mubr.f32.gmra.mrb[0].mxu0 %v132
    %v338 = vpop.f32.mrb[0].mxu0
    %v339 = vadd.f32 %v68, %v338
    %v340 = vpop.f32.mrb[0].mxu0
    %v341 = vadd.f32 %v72, %v340
    %342 = vmatprep.mubr.f32.mxu0 0.0
    %343 = vmatmul.mubr.f32.gmra.mrb[0].mxu0 %v135
    %v344 = vpop.f32.mrb[0].mxu0
    %v345 = vadd.f32 %v68, %v344
    %v346 = vpop.f32.mrb[0].mxu0
    %v347 = vadd.f32 %v72, %v346
    %348 = vmatprep.mubr.f32.mxu0 0.0
    %349 = vmatmul.mubr.f32.gmra.mrb[0].mxu0 %v138
    %v350 = vpop.f32.mrb[0].mxu0
    %v351 = vadd.f32 %v68, %v350
    %v352 = vpop.f32.mrb[0].mxu0
    %v353 = vadd.f32 %v72, %v352
    %354 = vmatprep.mubr.f32.mxu0 0.0
    %355 = vmatmul.mubr.f32.gmra.mrb[0].mxu0 %v141
    %v356 = vpop.f32.mrb[0].mxu0
    %v357 = vadd.f32 %v68, %v356
    %v358 = vpop.f32.mrb[0].mxu0
    %v359 = vadd.f32 %v72, %v358
    %360 = vmatprep.mubr.f32.mxu0 0.0
    %361 = vmatmul.mubr.f32.gmra.mrb[0].mxu0 %v144
    %v362 = vpop.f32.mrb[0].mxu0
    %v363 = vadd.f32 %v68, %v362
    %v364 = vpop.f32.mrb[0].mxu0
    %v365 = vadd.f32 %v72, %v364
    %366 = vmatprep.mubr.f32.mxu0 0.0
    %367 = vmatmul.mubr.f32.gmra.mrb[0].mxu0 %v147
    %v368 = vpop.f32.mrb[0].mxu0
    %v369 = vadd.f32 %v68, %v368
    %v370 = vpop.f32.mrb[0].mxu0
    %v371 = vadd.f32 %v72, %v370
    %372 = vmatprep.mubr.f32.mxu0 0.0
    %373 = vmatmul.mubr.f32.gmra.mrb[0].mxu0 %v150
    %v374 = vpop.f32.mrb[0].mxu0
    %v375 = vadd.f32 %v68, %v374
    %v376 = vpop.f32.mrb[0].mxu0
    %v377 = vadd.f32 %v72, %v376
    %378 = vmatprep.mubr.f32.mxu0 0.0
    %379 = vmatmul.mubr.f32.gmra.mrb[0].mxu0 %v153
    %v380 = vpop.f32.mrb[0].mxu0
    %v381 = vadd.f32 %v68, %v380
    %v382 = vpop.f32.mrb[0].mxu0
    %v383 = vadd.f32 %v72, %v382
    %384 = vmatprep.mubr.f32.mxu0 0.0
    %385 = vmatmul.mubr.f32.gmra.mrb[0].mxu0 %v156
    %v386 = vpop.f32.mrb[0].mxu0
    %v387 = vadd.f32 %v68, %v386
    %v388 = vpop.f32.mrb[0].mxu0
    %v389 = vadd.f32 %v72, %v388
    %390 = vmatprep.mubr.f32.mxu0 0.0
    %391 = vmatmul.mubr.f32.gmra.mrb[0].mxu0 %v159
    %v392 = vpop.f32.mrb[0].mxu0
    %v393 = vadd.f32 %v68, %v392
    %v394 = vpop.f32.mrb[0].mxu0
    %v395 = vadd.f32 %v72, %v394
    %396 = vmatprep.mubr.f32.mxu0 0.0
    %397 = vmatmul.mubr.f32.gmra.mrb[0].mxu0 %v162
    %v398 = vpop.f32.mrb[0].mxu0
    %v399 = vadd.f32 %v68, %v398
    %v400 = vpop.f32.mrb[0].mxu0
    %v401 = vadd.f32 %v72, %v400
    %402 = vmatprep.mubr.f32.mxu0 0.0
    %403 = vmatmul.mubr.f32.gmra.mrb[0].mxu0 %v165
    %v404 = vpop.f32.mrb[0].mxu0
    %v405 = vadd.f32 %v68, %v404
    %v406 = vpop.f32.mrb[0].mxu0
    %v407 = vadd.f32 %v72, %v406
    %408 = vmatprep.mubr.f32.mxu0 0.0
    %409 = vmatmul.mubr.f32.gmra.mrb[0].mxu0 %v168
    %v410 = vpop.f32.mrb[0].mxu0
    %v411 = vadd.f32 %v68, %v410
    %v412 = vpop.f32.mrb[0].mxu0
    %v413 = vadd.f32 %v72, %v412
    %414 = vmatprep.mubr.f32.mxu0 0.0
    %415 = vmatmul.mubr.f32.gmra.mrb[0].mxu0 %v171
    %v416 = vpop.f32.mrb[0].mxu0
    %v417 = vadd.f32 %v68, %v416
    %v418 = vpop.f32.mrb[0].mxu0
    %v419 = vadd.f32 %v72, %v418
    %420 = vmatprep.mubr.f32.mxu0 0.0
    %421 = vmatmul.mubr.f32.gmra.mrb[0].mxu0 %v174
    %v422 = vpop.f32.mrb[0].mxu0
    %v423 = vadd.f32 %v68, %v422
    %v424 = vpop.f32.mrb[0].mxu0
    %v425 = vadd.f32 %v72, %v424
    %426 = vmatprep.mubr.f32.mxu0 0.0
    %427 = vmatmul.mubr.f32.gmra.mrb[0].mxu0 %v177
    %v428 = vpop.f32.mrb[0].mxu0
    %v429 = vadd.f32 %v68, %v428
    %v430 = vpop.f32.mrb[0].mxu0
    %v431 = vadd.f32 %v72, %v430
    %432 = vmatprep.mubr.f32.mxu0 0.0
    %433 = vmatmul.mubr.f32.gmra.mrb[0].mxu0 %v180
    %v434 = vpop.f32.mrb[0].mxu0
    %v435 = vadd.f32 %v68, %v434
    %v436 = vpop.f32.mrb[0].mxu0
    %v437 = vadd.f32 %v72, %v436
    %438 = vdwg.mxu0
    %439 = vmatprep.subr.mxu0 %v50
    %440 = vmatpush1.msra.mxu0 %v49
    %441 = vmatprep.subr.mxu0 %v54
    %442 = vmatpush1.msra.mxu0 %v53
    %443 = vmatprep.subr.mxu0 %v58
    %444 = vmatpush1.msra.mxu0 %v57
    %445 = vmatprep.subr.mxu0 %v62
    %446 = vmatpush1.msra.mxu0 %v61
    %447 = vmatprep.subr.mxu0 0.0
    %448 = vmatpush1.msra.mxu0 0.0
    %449 = vmatprep.subr.mxu0 0.0
    %450 = vmatpush1.msra.mxu0 0.0
    %451 = vmatprep.subr.mxu0 0.0
    %452 = vmatpush1.msra.mxu0 0.0
    %453 = vmatprep.subr.mxu0 0.0
    %454 = vmatpush1.msra.mxu0 0.0
    %455 = vmatprep.subr.mxu0 0.0
    %456 = vmatpush1.msra.mxu0 0.0
    %457 = vmatprep.subr.mxu0 0.0
    %458 = vmatpush1.msra.mxu0 0.0
    %459 = vmatprep.subr.mxu0 0.0
    %460 = vmatpush1.msra.mxu0 0.0
    %461 = vmatprep.subr.mxu0 0.0
    %462 = vmatpush1.msra.mxu0 0.0
    %463 = vmatprep.subr.mxu0 0.0
    %464 = vmatpush1.msra.mxu0 0.0
    %465 = vmatprep.subr.mxu0 0.0
    %466 = vmatpush1.msra.mxu0 0.0
    %467 = vmatprep.subr.mxu0 0.0
    %468 = vmatpush1.msra.mxu0 0.0
    %469 = vmatprep.subr.mxu0 0.0
    %470 = vmatpush1.msra.mxu0 0.0
    %471 = vmatprep.subr.mxu0 0.0
    %472 = vmatpush1.msra.mxu0 0.0
    %473 = vmatprep.subr.mxu0 0.0
    %474 = vmatpush1.msra.mxu0 0.0
    %475 = vmatprep.subr.mxu0 0.0
    %476 = vmatpush1.msra.mxu0 0.0
    %477 = vmatprep.subr.mxu0 0.0
    %478 = vmatpush1.msra.mxu0 0.0
    %479 = vmatprep.subr.mxu0 0.0
    %480 = vmatpush1.msra.mxu0 0.0
    %481 = vmatprep.subr.mxu0 0.0
    %482 = vmatpush1.msra.mxu0 0.0
    %483 = vmatprep.subr.mxu0 0.0
    %484 = vmatpush1.msra.mxu0 0.0
    %485 = vmatprep.subr.mxu0 0.0
    %486 = vmatpush1.msra.mxu0 0.0
    %487 = vmatprep.subr.mxu0 0.0
    %488 = vmatpush1.msra.mxu0 0.0
    %489 = vmatprep.subr.mxu0 0.0
    %490 = vmatpush1.msra.mxu0 0.0
    %491 = vmatprep.subr.mxu0 0.0
    %492 = vmatpush1.msra.mxu0 0.0
    %493 = vmatprep.subr.mxu0 0.0
    %494 = vmatpush1.msra.mxu0 0.0
    %495 = vmatprep.subr.mxu0 0.0
    %496 = vmatpush1.msra.mxu0 0.0
    %497 = vmatprep.subr.mxu0 0.0
    %498 = vmatpush1.msra.mxu0 0.0
    %499 = vmatprep.subr.mxu0 0.0
    %500 = vmatpush1.msra.mxu0 0.0
    %501 = vmatprep.subr.mxu0 0.0
    %502 = vmatpush1.msra.mxu0 0.0
    %503 = vmatprep.mubr.f32.mxu0 0.0
    %504 = vmatmul.mubr.f32.gmra.mrb[0].mxu0 %v87
    %v505 = vpop.f32.mrb[0].mxu0
    %v506 = vadd.f32 %v76, %v505
    %v507 = vpop.f32.mrb[0].mxu0
    %v508 = vadd.f32 %v80, %v507
    %509 = vmatprep.mubr.f32.mxu0 0.0
    %510 = vmatmul.mubr.f32.gmra.mrb[0].mxu0 %v90
    %v511 = vpop.f32.mrb[0].mxu0
    %v512 = vadd.f32 %v76, %v511
    %v513 = vpop.f32.mrb[0].mxu0
    %v514 = vadd.f32 %v80, %v513
    %515 = vmatprep.mubr.f32.mxu0 0.0
    %516 = vmatmul.mubr.f32.gmra.mrb[0].mxu0 %v93
    %v517 = vpop.f32.mrb[0].mxu0
    %v518 = vadd.f32 %v76, %v517
    %v519 = vpop.f32.mrb[0].mxu0
    %v520 = vadd.f32 %v80, %v519
    %521 = vmatprep.mubr.f32.mxu0 0.0
    %522 = vmatmul.mubr.f32.gmra.mrb[0].mxu0 %v96
    %v523 = vpop.f32.mrb[0].mxu0
    %v524 = vadd.f32 %v76, %v523
    %v525 = vpop.f32.mrb[0].mxu0
    %v526 = vadd.f32 %v80, %v525
    %527 = vmatprep.mubr.f32.mxu0 0.0
    %528 = vmatmul.mubr.f32.gmra.mrb[0].mxu0 %v99
    %v529 = vpop.f32.mrb[0].mxu0
    %v530 = vadd.f32 %v76, %v529
    %v531 = vpop.f32.mrb[0].mxu0
    %v532 = vadd.f32 %v80, %v531
    %533 = vmatprep.mubr.f32.mxu0 0.0
    %534 = vmatmul.mubr.f32.gmra.mrb[0].mxu0 %v102
    %v535 = vpop.f32.mrb[0].mxu0
    %v536 = vadd.f32 %v76, %v535
    %v537 = vpop.f32.mrb[0].mxu0
    %v538 = vadd.f32 %v80, %v537
    %539 = vmatprep.mubr.f32.mxu0 0.0
    %540 = vmatmul.mubr.f32.gmra.mrb[0].mxu0 %v105
    %v541 = vpop.f32.mrb[0].mxu0
    %v542 = vadd.f32 %v76, %v541
    %v543 = vpop.f32.mrb[0].mxu0
    %v544 = vadd.f32 %v80, %v543
    %545 = vmatprep.mubr.f32.mxu0 0.0
    %546 = vmatmul.mubr.f32.gmra.mrb[0].mxu0 %v108
    %v547 = vpop.f32.mrb[0].mxu0
    %v548 = vadd.f32 %v76, %v547
    %v549 = vpop.f32.mrb[0].mxu0
    %v550 = vadd.f32 %v80, %v549
    %551 = vmatprep.mubr.f32.mxu0 0.0
    %552 = vmatmul.mubr.f32.gmra.mrb[0].mxu0 %v111
    %v553 = vpop.f32.mrb[0].mxu0
    %v554 = vadd.f32 %v76, %v553
    %v555 = vpop.f32.mrb[0].mxu0
    %v556 = vadd.f32 %v80, %v555
    %557 = vmatprep.mubr.f32.mxu0 0.0
    %558 = vmatmul.mubr.f32.gmra.mrb[0].mxu0 %v114
    %v559 = vpop.f32.mrb[0].mxu0
    %v560 = vadd.f32 %v76, %v559
    %v561 = vpop.f32.mrb[0].mxu0
    %v562 = vadd.f32 %v80, %v561
    %563 = vmatprep.mubr.f32.mxu0 0.0
    %564 = vmatmul.mubr.f32.gmra.mrb[0].mxu0 %v117
    %v565 = vpop.f32.mrb[0].mxu0
    %v566 = vadd.f32 %v76, %v565
    %v567 = vpop.f32.mrb[0].mxu0
    %v568 = vadd.f32 %v80, %v567
    %569 = vmatprep.mubr.f32.mxu0 0.0
    %570 = vmatmul.mubr.f32.gmra.mrb[0].mxu0 %v120
    %v571 = vpop.f32.mrb[0].mxu0
    %v572 = vadd.f32 %v76, %v571
    %v573 = vpop.f32.mrb[0].mxu0
    %v574 = vadd.f32 %v80, %v573
    %575 = vmatprep.mubr.f32.mxu0 0.0
    %576 = vmatmul.mubr.f32.gmra.mrb[0].mxu0 %v123
    %v577 = vpop.f32.mrb[0].mxu0
    %v578 = vadd.f32 %v76, %v577
    %v579 = vpop.f32.mrb[0].mxu0
    %v580 = vadd.f32 %v80, %v579
    %581 = vmatprep.mubr.f32.mxu0 0.0
    %582 = vmatmul.mubr.f32.gmra.mrb[0].mxu0 %v126
    %v583 = vpop.f32.mrb[0].mxu0
    %v584 = vadd.f32 %v76, %v583
    %v585 = vpop.f32.mrb[0].mxu0
    %v586 = vadd.f32 %v80, %v585
    %587 = vmatprep.mubr.f32.mxu0 0.0
    %588 = vmatmul.mubr.f32.gmra.mrb[0].mxu0 %v129
    %v589 = vpop.f32.mrb[0].mxu0
    %v590 = vadd.f32 %v76, %v589
    %v591 = vpop.f32.mrb[0].mxu0
    %v592 = vadd.f32 %v80, %v591
    %593 = vmatprep.mubr.f32.mxu0 0.0
    %594 = vmatmul.mubr.f32.gmra.mrb[0].mxu0 %v132
    %v595 = vpop.f32.mrb[0].mxu0
    %v596 = vadd.f32 %v76, %v595
    %v597 = vpop.f32.mrb[0].mxu0
    %v598 = vadd.f32 %v80, %v597
    %599 = vmatprep.mubr.f32.mxu0 0.0
    %600 = vmatmul.mubr.f32.gmra.mrb[0].mxu0 %v135
    %v601 = vpop.f32.mrb[0].mxu0
    %v602 = vadd.f32 %v76, %v601
    %v603 = vpop.f32.mrb[0].mxu0
    %v604 = vadd.f32 %v80, %v603
    %605 = vmatprep.mubr.f32.mxu0 0.0
    %606 = vmatmul.mubr.f32.gmra.mrb[0].mxu0 %v138
    %v607 = vpop.f32.mrb[0].mxu0
    %v608 = vadd.f32 %v76, %v607
    %v609 = vpop.f32.mrb[0].mxu0
    %v610 = vadd.f32 %v80, %v609
    %611 = vmatprep.mubr.f32.mxu0 0.0
    %612 = vmatmul.mubr.f32.gmra.mrb[0].mxu0 %v141
    %v613 = vpop.f32.mrb[0].mxu0
    %v614 = vadd.f32 %v76, %v613
    %v615 = vpop.f32.mrb[0].mxu0
    %v616 = vadd.f32 %v80, %v615
    %617 = vmatprep.mubr.f32.mxu0 0.0
    %618 = vmatmul.mubr.f32.gmra.mrb[0].mxu0 %v144
    %v619 = vpop.f32.mrb[0].mxu0
    %v620 = vadd.f32 %v76, %v619
    %v621 = vpop.f32.mrb[0].mxu0
    %v622 = vadd.f32 %v80, %v621
    %623 = vmatprep.mubr.f32.mxu0 0.0
    %624 = vmatmul.mubr.f32.gmra.mrb[0].mxu0 %v147
    %v625 = vpop.f32.mrb[0].mxu0
    %v626 = vadd.f32 %v76, %v625
    %v627 = vpop.f32.mrb[0].mxu0
    %v628 = vadd.f32 %v80, %v627
    %629 = vmatprep.mubr.f32.mxu0 0.0
    %630 = vmatmul.mubr.f32.gmra.mrb[0].mxu0 %v150
    %v631 = vpop.f32.mrb[0].mxu0
    %v632 = vadd.f32 %v76, %v631
    %v633 = vpop.f32.mrb[0].mxu0
    %v634 = vadd.f32 %v80, %v633
    %635 = vmatprep.mubr.f32.mxu0 0.0
    %636 = vmatmul.mubr.f32.gmra.mrb[0].mxu0 %v153
    %v637 = vpop.f32.mrb[0].mxu0
    %v638 = vadd.f32 %v76, %v637
    %v639 = vpop.f32.mrb[0].mxu0
    %v640 = vadd.f32 %v80, %v639
    %641 = vmatprep.mubr.f32.mxu0 0.0
    %642 = vmatmul.mubr.f32.gmra.mrb[0].mxu0 %v156
    %v643 = vpop.f32.mrb[0].mxu0
    %v644 = vadd.f32 %v76, %v643
    %v645 = vpop.f32.mrb[0].mxu0
    %v646 = vadd.f32 %v80, %v645
    %647 = vmatprep.mubr.f32.mxu0 0.0
    %648 = vmatmul.mubr.f32.gmra.mrb[0].mxu0 %v159
    %v649 = vpop.f32.mrb[0].mxu0
    %v650 = vadd.f32 %v76, %v649
    %v651 = vpop.f32.mrb[0].mxu0
    %v652 = vadd.f32 %v80, %v651
    %653 = vmatprep.mubr.f32.mxu0 0.0
    %654 = vmatmul.mubr.f32.gmra.mrb[0].mxu0 %v162
    %v655 = vpop.f32.mrb[0].mxu0
    %v656 = vadd.f32 %v76, %v655
    %v657 = vpop.f32.mrb[0].mxu0
    %v658 = vadd.f32 %v80, %v657
    %659 = vmatprep.mubr.f32.mxu0 0.0
    %660 = vmatmul.mubr.f32.gmra.mrb[0].mxu0 %v165
    %v661 = vpop.f32.mrb[0].mxu0
    %v662 = vadd.f32 %v76, %v661
    %v663 = vpop.f32.mrb[0].mxu0
    %v664 = vadd.f32 %v80, %v663
    %665 = vmatprep.mubr.f32.mxu0 0.0
    %666 = vmatmul.mubr.f32.gmra.mrb[0].mxu0 %v168
    %v667 = vpop.f32.mrb[0].mxu0
    %v668 = vadd.f32 %v76, %v667
    %v669 = vpop.f32.mrb[0].mxu0
    %v670 = vadd.f32 %v80, %v669
    %671 = vmatprep.mubr.f32.mxu0 0.0
    %672 = vmatmul.mubr.f32.gmra.mrb[0].mxu0 %v171
    %v673 = vpop.f32.mrb[0].mxu0
    %v674 = vadd.f32 %v76, %v673
    %v675 = vpop.f32.mrb[0].mxu0
    %v676 = vadd.f32 %v80, %v675
    %677 = vmatprep.mubr.f32.mxu0 0.0
    %678 = vmatmul.mubr.f32.gmra.mrb[0].mxu0 %v174
    %v679 = vpop.f32.mrb[0].mxu0
    %v680 = vadd.f32 %v76, %v679
    %v681 = vpop.f32.mrb[0].mxu0
    %v682 = vadd.f32 %v80, %v681
    %683 = vmatprep.mubr.f32.mxu0 0.0
    %684 = vmatmul.mubr.f32.gmra.mrb[0].mxu0 %v177
    %v685 = vpop.f32.mrb[0].mxu0
    %v686 = vadd.f32 %v76, %v685
    %v687 = vpop.f32.mrb[0].mxu0
    %v688 = vadd.f32 %v80, %v687
    %689 = vmatprep.mubr.f32.mxu0 0.0
    %690 = vmatmul.mubr.f32.gmra.mrb[0].mxu0 %v180
    %v691 = vpop.f32.mrb[0].mxu0
    %v692 = vadd.f32 %v76, %v691
    %v693 = vpop.f32.mrb[0].mxu0
    %v694 = vadd.f32 %v80, %v693
    %695 = vdwg.mxu0
    %696 = vst [vmem:[#allocation2] sm:$0xff] %v249
    %697 = vst [vmem:[#allocation2 + $0x8] sm:$0xff] %v251
    %698 = vst [vmem:[#allocation2 + $0x10] sm:$0xff] %v506
    %699 = vst [vmem:[#allocation2 + $0x18] sm:$0xff] %v508
    %700 = vst [vmem:[#allocation2 + $0x20] sm:$0xff] %v255
    %701 = vst [vmem:[#allocation2 + $0x28] sm:$0xff] %v257
    %702 = vst [vmem:[#allocation2 + $0x30] sm:$0xff] %v512
    %703 = vst [vmem:[#allocation2 + $0x38] sm:$0xff] %v514
    %704 = vst [vmem:[#allocation2 + $0x40] sm:$0xff] %v261
    %705 = vst [vmem:[#allocation2 + $0x48] sm:$0xff] %v263
    %706 = vst [vmem:[#allocation2 + $0x50] sm:$0xff] %v518
    %707 = vst [vmem:[#allocation2 + $0x58] sm:$0xff] %v520
    %708 = vst [vmem:[#allocation2 + $0x60] sm:$0xff] %v267
    %709 = vst [vmem:[#allocation2 + $0x68] sm:$0xff] %v269
    %710 = vst [vmem:[#allocation2 + $0x70] sm:$0xff] %v524
    %711 = vst [vmem:[#allocation2 + $0x78] sm:$0xff] %v526
    %712 = vst [vmem:[#allocation2 + $0x80] sm:$0xff] %v273
    %713 = vst [vmem:[#allocation2 + $0x88] sm:$0xff] %v275
    %714 = vst [vmem:[#allocation2 + $0x90] sm:$0xff] %v530
    %715 = vst [vmem:[#allocation2 + $0x98] sm:$0xff] %v532
    %716 = vst [vmem:[#allocation2 + $0xa0] sm:$0xff] %v279
    %717 = vst [vmem:[#allocation2 + $0xa8] sm:$0xff] %v281
    %718 = vst [vmem:[#allocation2 + $0xb0] sm:$0xff] %v536
    %719 = vst [vmem:[#allocation2 + $0xb8] sm:$0xff] %v538
    %720 = vst [vmem:[#allocation2 + $0xc0] sm:$0xff] %v285
    %721 = vst [vmem:[#allocation2 + $0xc8] sm:$0xff] %v287
    %722 = vst [vmem:[#allocation2 + $0xd0] sm:$0xff] %v542
    %723 = vst [vmem:[#allocation2 + $0xd8] sm:$0xff] %v544
    %724 = vst [vmem:[#allocation2 + $0xe0] sm:$0xff] %v291
    %725 = vst [vmem:[#allocation2 + $0xe8] sm:$0xff] %v293
    %726 = vst [vmem:[#allocation2 + $0xf0] sm:$0xff] %v548
    %727 = vst [vmem:[#allocation2 + $0xf8] sm:$0xff] %v550
    %728 = vst [vmem:[#allocation2 + $0x100] sm:$0xff] %v297
    %729 = vst [vmem:[#allocation2 + $0x108] sm:$0xff] %v299
    %730 = vst [vmem:[#allocation2 + $0x110] sm:$0xff] %v554
    %731 = vst [vmem:[#allocation2 + $0x118] sm:$0xff] %v556
    %732 = vst [vmem:[#allocation2 + $0x120] sm:$0xff] %v303
    %733 = vst [vmem:[#allocation2 + $0x128] sm:$0xff] %v305
    %734 = vst [vmem:[#allocation2 + $0x130] sm:$0xff] %v560
    %735 = vst [vmem:[#allocation2 + $0x138] sm:$0xff] %v562
    %736 = vst [vmem:[#allocation2 + $0x140] sm:$0xff] %v309
    %737 = vst [vmem:[#allocation2 + $0x148] sm:$0xff] %v311
    %738 = vst [vmem:[#allocation2 + $0x150] sm:$0xff] %v566
    %739 = vst [vmem:[#allocation2 + $0x158] sm:$0xff] %v568
    %740 = vst [vmem:[#allocation2 + $0x160] sm:$0xff] %v315
    %741 = vst [vmem:[#allocation2 + $0x168] sm:$0xff] %v317
    %742 = vst [vmem:[#allocation2 + $0x170] sm:$0xff] %v572
    %743 = vst [vmem:[#allocation2 + $0x178] sm:$0xff] %v574
    %744 = vst [vmem:[#allocation2 + $0x180] sm:$0xff] %v321
    %745 = vst [vmem:[#allocation2 + $0x188] sm:$0xff] %v323
    %746 = vst [vmem:[#allocation2 + $0x190] sm:$0xff] %v578
    %747 = vst [vmem:[#allocation2 + $0x198] sm:$0xff] %v580
    %748 = vst [vmem:[#allocation2 + $0x1a0] sm:$0xff] %v327
    %749 = vst [vmem:[#allocation2 + $0x1a8] sm:$0xff] %v329
    %750 = vst [vmem:[#allocation2 + $0x1b0] sm:$0xff] %v584
    %751 = vst [vmem:[#allocation2 + $0x1b8] sm:$0xff] %v586
    %752 = vst [vmem:[#allocation2 + $0x1c0] sm:$0xff] %v333
    %753 = vst [vmem:[#allocation2 + $0x1c8] sm:$0xff] %v335
    %754 = vst [vmem:[#allocation2 + $0x1d0] sm:$0xff] %v590
    %755 = vst [vmem:[#allocation2 + $0x1d8] sm:$0xff] %v592
    %756 = vst [vmem:[#allocation2 + $0x1e0] sm:$0xff] %v339
    %757 = vst [vmem:[#allocation2 + $0x1e8] sm:$0xff] %v341
    %758 = vst [vmem:[#allocation2 + $0x1f0] sm:$0xff] %v596
    %759 = vst [vmem:[#allocation2 + $0x1f8] sm:$0xff] %v598
    %760 = vst [vmem:[#allocation2 + $0x200] sm:$0xff] %v345
    %761 = vst [vmem:[#allocation2 + $0x208] sm:$0xff] %v347
    %762 = vst [vmem:[#allocation2 + $0x210] sm:$0xff] %v602
    %763 = vst [vmem:[#allocation2 + $0x218] sm:$0xff] %v604
    %764 = vst [vmem:[#allocation2 + $0x220] sm:$0xff] %v351
    %765 = vst [vmem:[#allocation2 + $0x228] sm:$0xff] %v353
    %766 = vst [vmem:[#allocation2 + $0x230] sm:$0xff] %v608
    %767 = vst [vmem:[#allocation2 + $0x238] sm:$0xff] %v610
    %768 = vst [vmem:[#allocation2 + $0x240] sm:$0xff] %v357
    %769 = vst [vmem:[#allocation2 + $0x248] sm:$0xff] %v359
    %770 = vst [vmem:[#allocation2 + $0x250] sm:$0xff] %v614
    %771 = vst [vmem:[#allocation2 + $0x258] sm:$0xff] %v616
    %772 = vst [vmem:[#allocation2 + $0x260] sm:$0xff] %v363
    %773 = vst [vmem:[#allocation2 + $0x268] sm:$0xff] %v365
    %774 = vst [vmem:[#allocation2 + $0x270] sm:$0xff] %v620
    %775 = vst [vmem:[#allocation2 + $0x278] sm:$0xff] %v622
    %776 = vst [vmem:[#allocation2 + $0x280] sm:$0xff] %v369
    %777 = vst [vmem:[#allocation2 + $0x288] sm:$0xff] %v371
    %778 = vst [vmem:[#allocation2 + $0x290] sm:$0xff] %v626
    %779 = vst [vmem:[#allocation2 + $0x298] sm:$0xff] %v628
    %780 = vst [vmem:[#allocation2 + $0x2a0] sm:$0xff] %v375
    %781 = vst [vmem:[#allocation2 + $0x2a8] sm:$0xff] %v377
    %782 = vst [vmem:[#allocation2 + $0x2b0] sm:$0xff] %v632
    %783 = vst [vmem:[#allocation2 + $0x2b8] sm:$0xff] %v634
    %784 = vst [vmem:[#allocation2 + $0x2c0] sm:$0xff] %v381
    %785 = vst [vmem:[#allocation2 + $0x2c8] sm:$0xff] %v383
    %786 = vst [vmem:[#allocation2 + $0x2d0] sm:$0xff] %v638
    %787 = vst [vmem:[#allocation2 + $0x2d8] sm:$0xff] %v640
    %788 = vst [vmem:[#allocation2 + $0x2e0] sm:$0xff] %v387
    %789 = vst [vmem:[#allocation2 + $0x2e8] sm:$0xff] %v389
    %790 = vst [vmem:[#allocation2 + $0x2f0] sm:$0xff] %v644
    %791 = vst [vmem:[#allocation2 + $0x2f8] sm:$0xff] %v646
    %792 = vst [vmem:[#allocation2 + $0x300] sm:$0xff] %v393
    %793 = vst [vmem:[#allocation2 + $0x308] sm:$0xff] %v395
    %794 = vst [vmem:[#allocation2 + $0x310] sm:$0xff] %v650
    %795 = vst [vmem:[#allocation2 + $0x318] sm:$0xff] %v652
    %796 = vst [vmem:[#allocation2 + $0x320] sm:$0xff] %v399
    %797 = vst [vmem:[#allocation2 + $0x328] sm:$0xff] %v401
    %798 = vst [vmem:[#allocation2 + $0x330] sm:$0xff] %v656
    %799 = vst [vmem:[#allocation2 + $0x338] sm:$0xff] %v658
    %800 = vst [vmem:[#allocation2 + $0x340] sm:$0xff] %v405
    %801 = vst [vmem:[#allocation2 + $0x348] sm:$0xff] %v407
    %802 = vst [vmem:[#allocation2 + $0x350] sm:$0xff] %v662
    %803 = vst [vmem:[#allocation2 + $0x358] sm:$0xff] %v664
    %804 = vst [vmem:[#allocation2 + $0x360] sm:$0xff] %v411
    %805 = vst [vmem:[#allocation2 + $0x368] sm:$0xff] %v413
    %806 = vst [vmem:[#allocation2 + $0x370] sm:$0xff] %v668
    %807 = vst [vmem:[#allocation2 + $0x378] sm:$0xff] %v670
    %808 = vst [vmem:[#allocation2 + $0x380] sm:$0xff] %v417
    %809 = vst [vmem:[#allocation2 + $0x388] sm:$0xff] %v419
    %810 = vst [vmem:[#allocation2 + $0x390] sm:$0xff] %v674
    %811 = vst [vmem:[#allocation2 + $0x398] sm:$0xff] %v676
    %812 = vst [vmem:[#allocation2 + $0x3a0] sm:$0xff] %v423
    %813 = vst [vmem:[#allocation2 + $0x3a8] sm:$0xff] %v425
    %814 = vst [vmem:[#allocation2 + $0x3b0] sm:$0xff] %v680
    %815 = vst [vmem:[#allocation2 + $0x3b8] sm:$0xff] %v682
    %816 = vst [vmem:[#allocation2 + $0x3c0] sm:$0xff] %v429
    %817 = vst [vmem:[#allocation2 + $0x3c8] sm:$0xff] %v431
    %818 = vst [vmem:[#allocation2 + $0x3d0] sm:$0xff] %v686
    %819 = vst [vmem:[#allocation2 + $0x3d8] sm:$0xff] %v688
    %820 = vst [vmem:[#allocation2 + $0x3e0] sm:$0xff] %v435
    %821 = vst [vmem:[#allocation2 + $0x3e8] sm:$0xff] %v437
    %822 = vst [vmem:[#allocation2 + $0x3f0] sm:$0xff] %v692
    %823 = vst [vmem:[#allocation2 + $0x3f8] sm:$0xff] %v694
    // Predicated region
    $region14: #{tpu_custom_call.1} parent=1 // pred_check
      _
    $region15: #{tpu_custom_call.1} parent=1 // pred_check_branch
      %825 = sbr.rel (0) target = $region17
    $region16: #{tpu_custom_call.1} parent=1 // pred_region
      %s827 = ssub.s32 16384, 16384
      %828 = vsyncadd [#allocation3], %s827
      %s829 = sshll.u32 [#allocation2], 4
      %s830 = int_to_ptr.vmem [resolvable:$true] %s829
      %835 = dma.vmem_to_hbm [thread:$0]  %s830, 16384, %s3, [#allocation3], 512, 512, 32
    $region17: #{tpu_custom_call.1} parent=1 // pred_fallthru
      _
    // Predicated region
    $region18: #{tpu_custom_call.1} parent=1 // pred_check
      _
    $region19: #{tpu_custom_call.1} parent=1 // pred_check_branch
      %837 = sbr.rel (0) target = $region21
    $region20: #{tpu_custom_call.1} parent=1 // pred_region
      %838 = dma.done [#allocation3], 16384
    $region21: #{tpu_custom_call.1} parent=1 // pred_fallthru
      _
    %839 = vsyncpa [#allocation3], 1

// kernel: tpu_custom_call.1
$region0: #{tpu_custom_call.1}
  #allocation0 [shape = 'u32[]', space=smem, size = 0x4, offset = 0x4, fixed_abs, tag = 'smem constant byte address 0x4 - core index']
  #allocation1 [shape = 'u32[144,128]{1,0:T(1,128)}', space=vmem, size = 0x12000, scoped, tag = 'internal scratch']
  %s0 = inlined_call_operand.vmem [shape: f32[256,32], index: 0, kind: input, shape index: {}]
  %s1 = inlined_call_operand.vmem [shape: f32[32,512], index: 1, kind: input, shape index: {}]
  %s2 = inlined_call_operand.vmem [shape: f32[1,512], index: 2, kind: input, shape index: {}]
  %s3 = inlined_call_operand.hbm [shape: f32[256,512], index: 3, kind: output, shape index: {}]
  %s4 = sld [smem:[#allocation0]]
  $region22: #{tpu_custom_call.1} parent=0
    _
  %s6 = ssub.s32 1, %s4
  %s7 = scalar_select 0, %s6, %s4
  $region1: #{tpu_custom_call.1} parent=0
    #allocation2 [shape = 'u8[524288]{0}', space=vmem, size = 0x80000, scoped, tag = 'output window, operand 0, single buffered']
    #allocation3 [shape = 's32[1]{0}', space=sflag, size = 0x4, scoped, tag = 'scoped memory for tpu_custom_call.1']
    %8 = vsyncpa [#allocation3], 0
    // Predicated region
    $region2: #{tpu_custom_call.1} parent=1 // pred_check
      _
    $region3: #{tpu_custom_call.1} parent=1 // pred_check_branch
      %10 = sbr.rel (0) target = $region5
    $region4: #{tpu_custom_call.1} parent=1 // pred_region
      _
    $region5: #{tpu_custom_call.1} parent=1 // pred_fallthru
      _
    // Predicated region
    $region6: #{tpu_custom_call.1} parent=1 // pred_check
      _
    $region7: #{tpu_custom_call.1} parent=1 // pred_check_branch
      %12 = sbr.rel (0) target = $region9
    $region8: #{tpu_custom_call.1} parent=1 // pred_region
      _
    $region9: #{tpu_custom_call.1} parent=1 // pred_fallthru
      _
    // Predicated region
    $region10: #{tpu_custom_call.1} parent=1 // pred_check
      _
    $region11: #{tpu_custom_call.1} parent=1 // pred_check_branch
      %14 = sbr.rel (0) target = $region13
    $region12: #{tpu_custom_call.1} parent=1 // pred_region
      _
    $region13: #{tpu_custom_call.1} parent=1 // pred_fallthru
      _
    %v15 = vld [vmem:[%s0] sm:$0xff]
    %v16 = vld [vmem:[%s0 + $0x8] sm:$0xff]
    %v17 = vld [vmem:[%s0 + $0x10] sm:$0xff]
    %v18 = vld [vmem:[%s0 + $0x18] sm:$0xff]
    %v19 = vld [vmem:[%s0 + $0x20] sm:$0xff]
    %v20 = vld [vmem:[%s0 + $0x28] sm:$0xff]
    %v21 = vld [vmem:[%s0 + $0x30] sm:$0xff]
    %v22 = vld [vmem:[%s0 + $0x38] sm:$0xff]
    %v23 = vld [vmem:[%s0 + $0x40] sm:$0xff]
    %v24 = vld [vmem:[%s0 + $0x48] sm:$0xff]
    %v25 = vld [vmem:[%s0 + $0x50] sm:$0xff]
    %v26 = vld [vmem:[%s0 + $0x58] sm:$0xff]
    %v27 = vld [vmem:[%s0 + $0x60] sm:$0xff]
    %v28 = vld [vmem:[%s0 + $0x68] sm:$0xff]
    %v29 = vld [vmem:[%s0 + $0x70] sm:$0xff]
    %v30 = vld [vmem:[%s0 + $0x78] sm:$0xff]
    %v31 = vld [vmem:[%s0 + $0x80] sm:$0xff]
    %v32 = vld [vmem:[%s0 + $0x88] sm:$0xff]
    %v33 = vld [vmem:[%s0 + $0x90] sm:$0xff]
    %v34 = vld [vmem:[%s0 + $0x98] sm:$0xff]
    %v35 = vld [vmem:[%s0 + $0xa0] sm:$0xff]
    %v36 = vld [vmem:[%s0 + $0xa8] sm:$0xff]
    %v37 = vld [vmem:[%s0 + $0xb0] sm:$0xff]
    %v38 = vld [vmem:[%s0 + $0xb8] sm:$0xff]
    %v39 = vld [vmem:[%s0 + $0xc0] sm:$0xff]
    %v40 = vld [vmem:[%s0 + $0xc8] sm:$0xff]
    %v41 = vld [vmem:[%s0 + $0xd0] sm:$0xff]
    %v42 = vld [vmem:[%s0 + $0xd8] sm:$0xff]
    %v43 = vld [vmem:[%s0 + $0xe0] sm:$0xff]
    %v44 = vld [vmem:[%s0 + $0xe8] sm:$0xff]
    %v45 = vld [vmem:[%s0 + $0xf0] sm:$0xff]
    %v46 = vld [vmem:[%s0 + $0xf8] sm:$0xff]
    %v47 = vld [vmem:[%s1] sm:$0xff]
    %v48 = vld [vmem:[%s1 + $0x8] sm:$0xff]
    %v49 = vld [vmem:[%s1 + $0x10] sm:$0xff]
    %v50 = vld [vmem:[%s1 + $0x18] sm:$0xff]
    %v51 = vld [vmem:[%s1 + $0x20] sm:$0xff]
    %v52 = vld [vmem:[%s1 + $0x28] sm:$0xff]
    %v53 = vld [vmem:[%s1 + $0x30] sm:$0xff]
    %v54 = vld [vmem:[%s1 + $0x38] sm:$0xff]
    %v55 = vld [vmem:[%s1 + $0x40] sm:$0xff]
    %v56 = vld [vmem:[%s1 + $0x48] sm:$0xff]
    %v57 = vld [vmem:[%s1 + $0x50] sm:$0xff]
    %v58 = vld [vmem:[%s1 + $0x58] sm:$0xff]
    %v59 = vld [vmem:[%s1 + $0x60] sm:$0xff]
    %v60 = vld [vmem:[%s1 + $0x68] sm:$0xff]
    %v61 = vld [vmem:[%s1 + $0x70] sm:$0xff]
    %v62 = vld [vmem:[%s1 + $0x78] sm:$0xff]
    %v63 = vld [vmem:[%s2] sm:$0xf]
    %v65 = vlaneseq
    %v66 = vshrl.u32 %v65, 7
    %v67 = vsub.s32 0, %v66
    %v68 = vrot.slane %v63, %v67
    %v69 = vlaneseq
    %v70 = vshrl.u32 %v69, 7
    %v71 = vsub.s32 1, %v70
    %v72 = vrot.slane %v63, %v71
    %v73 = vlaneseq
    %v74 = vshrl.u32 %v73, 7
    %v75 = vsub.s32 2, %v74
    %v76 = vrot.slane %v63, %v75
    %v77 = vlaneseq
    %v78 = vshrl.u32 %v77, 7
    %v79 = vsub.s32 3, %v78
    %v80 = vrot.slane %v63, %v79
    %vm85 = vcmask 261120
    %v87 = vsel %vm85, %v15, 0
    %v90 = vsel %vm85, %v16, 0
    %v93 = vsel %vm85, %v17, 0
    %v96 = vsel %vm85, %v18, 0
    %v99 = vsel %vm85, %v19, 0
    %v102 = vsel %vm85, %v20, 0
    %v105 = vsel %vm85, %v21, 0
    %v108 = vsel %vm85, %v22, 0
    %v111 = vsel %vm85, %v23, 0
    %v114 = vsel %vm85, %v24, 0
    %v117 = vsel %vm85, %v25, 0
    %v120 = vsel %vm85, %v26, 0
    %v123 = vsel %vm85, %v27, 0
    %v126 = vsel %vm85, %v28, 0
    %v129 = vsel %vm85, %v29, 0
    %v132 = vsel %vm85, %v30, 0
    %v135 = vsel %vm85, %v31, 0
    %v138 = vsel %vm85, %v32, 0
    %v141 = vsel %vm85, %v33, 0
    %v144 = vsel %vm85, %v34, 0
    %v147 = vsel %vm85, %v35, 0
    %v150 = vsel %vm85, %v36, 0
    %v153 = vsel %vm85, %v37, 0
    %v156 = vsel %vm85, %v38, 0
    %v159 = vsel %vm85, %v39, 0
    %v162 = vsel %vm85, %v40, 0
    %v165 = vsel %vm85, %v41, 0
    %v168 = vsel %vm85, %v42, 0
    %v171 = vsel %vm85, %v43, 0
    %v174 = vsel %vm85, %v44, 0
    %v177 = vsel %vm85, %v45, 0
    %v180 = vsel %vm85, %v46, 0
    %182 = vmatprep.subr.mxu0 %v48
    %183 = vmatpush1.msra.mxu0 %v47
    %184 = vmatprep.subr.mxu0 %v52
    %185 = vmatpush1.msra.mxu0 %v51
    %186 = vmatprep.subr.mxu0 %v56
    %187 = vmatpush1.msra.mxu0 %v55
    %188 = vmatprep.subr.mxu0 %v60
    %189 = vmatpush1.msra.mxu0 %v59
    %190 = vmatprep.subr.mxu0 0.0
    %191 = vmatpush1.msra.mxu0 0.0
    %192 = vmatprep.subr.mxu0 0.0
    %193 = vmatpush1.msra.mxu0 0.0
    %194 = vmatprep.subr.mxu0 0.0
    %195 = vmatpush1.msra.mxu0 0.0
    %196 = vmatprep.subr.mxu0 0.0
    %197 = vmatpush1.msra.mxu0 0.0
    %198 = vmatprep.subr.mxu0 0.0
    %199 = vmatpush1.msra.mxu0 0.0
    %200 = vmatprep.subr.mxu0 0.0
    %201 = vmatpush1.msra.mxu0 0.0
    %202 = vmatprep.subr.mxu0 0.0
    %203 = vmatpush1.msra.mxu0 0.0
    %204 = vmatprep.subr.mxu0 0.0
    %205 = vmatpush1.msra.mxu0 0.0
    %206 = vmatprep.subr.mxu0 0.0
    %207 = vmatpush1.msra.mxu0 0.0
    %208 = vmatprep.subr.mxu0 0.0
    %209 = vmatpush1.msra.mxu0 0.0
    %210 = vmatprep.subr.mxu0 0.0
    %211 = vmatpush1.msra.mxu0 0.0
    %212 = vmatprep.subr.mxu0 0.0
    %213 = vmatpush1.msra.mxu0 0.0
    %214 = vmatprep.subr.mxu0 0.0
    %215 = vmatpush1.msra.mxu0 0.0
    %216 = vmatprep.subr.mxu0 0.0
    %217 = vmatpush1.msra.mxu0 0.0
    %218 = vmatprep.subr.mxu0 0.0
    %219 = vmatpush1.msra.mxu0 0.0
    %220 = vmatprep.subr.mxu0 0.0
    %221 = vmatpush1.msra.mxu0 0.0
    %222 = vmatprep.subr.mxu0 0.0
    %223 = vmatpush1.msra.mxu0 0.0
    %224 = vmatprep.subr.mxu0 0.0
    %225 = vmatpush1.msra.mxu0 0.0
    %226 = vmatprep.subr.mxu0 0.0
    %227 = vmatpush1.msra.mxu0 0.0
    %228 = vmatprep.subr.mxu0 0.0
    %229 = vmatpush1.msra.mxu0 0.0
    %230 = vmatprep.subr.mxu0 0.0
    %231 = vmatpush1.msra.mxu0 0.0
    %232 = vmatprep.subr.mxu0 0.0
    %233 = vmatpush1.msra.mxu0 0.0
    %234 = vmatprep.subr.mxu0 0.0
    %235 = vmatpush1.msra.mxu0 0.0
    %236 = vmatprep.subr.mxu0 0.0
    %237 = vmatpush1.msra.mxu0 0.0
    %238 = vmatprep.subr.mxu0 0.0
    %239 = vmatpush1.msra.mxu0 0.0
    %240 = vmatprep.subr.mxu0 0.0
    %241 = vmatpush1.msra.mxu0 0.0
    %242 = vmatprep.subr.mxu0 0.0
    %243 = vmatpush1.msra.mxu0 0.0
    %244 = vmatprep.subr.mxu0 0.0
    %245 = vmatpush1.msra.mxu0 0.0
    %246 = vmatprep.mubr.f32.mxu0 0.0
    %247 = vmatmul.mubr.f32.gmra.mrb[0].mxu0 %v87
    %v248 = vpop.f32.mrb[0].mxu0
    %v249 = vadd.f32 %v68, %v248
    %v250 = vpop.f32.mrb[0].mxu0
    %v251 = vadd.f32 %v72, %v250
    %252 = vmatprep.mubr.f32.mxu0 0.0
    %253 = vmatmul.mubr.f32.gmra.mrb[0].mxu0 %v90
    %v254 = vpop.f32.mrb[0].mxu0
    %v255 = vadd.f32 %v68, %v254
    %v256 = vpop.f32.mrb[0].mxu0
    %v257 = vadd.f32 %v72, %v256
    %258 = vmatprep.mubr.f32.mxu0 0.0
    %259 = vmatmul.mubr.f32.gmra.mrb[0].mxu0 %v93
    %v260 = vpop.f32.mrb[0].mxu0
    %v261 = vadd.f32 %v68, %v260
    %v262 = vpop.f32.mrb[0].mxu0
    %v263 = vadd.f32 %v72, %v262
    %264 = vmatprep.mubr.f32.mxu0 0.0
    %265 = vmatmul.mubr.f32.gmra.mrb[0].mxu0 %v96
    %v266 = vpop.f32.mrb[0].mxu0
    %v267 = vadd.f32 %v68, %v266
    %v268 = vpop.f32.mrb[0].mxu0
    %v269 = vadd.f32 %v72, %v268
    %270 = vmatprep.mubr.f32.mxu0 0.0
    %271 = vmatmul.mubr.f32.gmra.mrb[0].mxu0 %v99
    %v272 = vpop.f32.mrb[0].mxu0
    %v273 = vadd.f32 %v68, %v272
    %v274 = vpop.f32.mrb[0].mxu0
    %v275 = vadd.f32 %v72, %v274
    %276 = vmatprep.mubr.f32.mxu0 0.0
    %277 = vmatmul.mubr.f32.gmra.mrb[0].mxu0 %v102
    %v278 = vpop.f32.mrb[0].mxu0
    %v279 = vadd.f32 %v68, %v278
    %v280 = vpop.f32.mrb[0].mxu0
    %v281 = vadd.f32 %v72, %v280
    %282 = vmatprep.mubr.f32.mxu0 0.0
    %283 = vmatmul.mubr.f32.gmra.mrb[0].mxu0 %v105
    %v284 = vpop.f32.mrb[0].mxu0
    %v285 = vadd.f32 %v68, %v284
    %v286 = vpop.f32.mrb[0].mxu0
    %v287 = vadd.f32 %v72, %v286
    %288 = vmatprep.mubr.f32.mxu0 0.0
    %289 = vmatmul.mubr.f32.gmra.mrb[0].mxu0 %v108
    %v290 = vpop.f32.mrb[0].mxu0
    %v291 = vadd.f32 %v68, %v290
    %v292 = vpop.f32.mrb[0].mxu0
    %v293 = vadd.f32 %v72, %v292
    %294 = vmatprep.mubr.f32.mxu0 0.0
    %295 = vmatmul.mubr.f32.gmra.mrb[0].mxu0 %v111
    %v296 = vpop.f32.mrb[0].mxu0
    %v297 = vadd.f32 %v68, %v296
    %v298 = vpop.f32.mrb[0].mxu0
    %v299 = vadd.f32 %v72, %v298
    %300 = vmatprep.mubr.f32.mxu0 0.0
    %301 = vmatmul.mubr.f32.gmra.mrb[0].mxu0 %v114
    %v302 = vpop.f32.mrb[0].mxu0
    %v303 = vadd.f32 %v68, %v302
    %v304 = vpop.f32.mrb[0].mxu0
    %v305 = vadd.f32 %v72, %v304
    %306 = vmatprep.mubr.f32.mxu0 0.0
    %307 = vmatmul.mubr.f32.gmra.mrb[0].mxu0 %v117
    %v308 = vpop.f32.mrb[0].mxu0
    %v309 = vadd.f32 %v68, %v308
    %v310 = vpop.f32.mrb[0].mxu0
    %v311 = vadd.f32 %v72, %v310
    %312 = vmatprep.mubr.f32.mxu0 0.0
    %313 = vmatmul.mubr.f32.gmra.mrb[0].mxu0 %v120
    %v314 = vpop.f32.mrb[0].mxu0
    %v315 = vadd.f32 %v68, %v314
    %v316 = vpop.f32.mrb[0].mxu0
    %v317 = vadd.f32 %v72, %v316
    %318 = vmatprep.mubr.f32.mxu0 0.0
    %319 = vmatmul.mubr.f32.gmra.mrb[0].mxu0 %v123
    %v320 = vpop.f32.mrb[0].mxu0
    %v321 = vadd.f32 %v68, %v320
    %v322 = vpop.f32.mrb[0].mxu0
    %v323 = vadd.f32 %v72, %v322
    %324 = vmatprep.mubr.f32.mxu0 0.0
    %325 = vmatmul.mubr.f32.gmra.mrb[0].mxu0 %v126
    %v326 = vpop.f32.mrb[0].mxu0
    %v327 = vadd.f32 %v68, %v326
    %v328 = vpop.f32.mrb[0].mxu0
    %v329 = vadd.f32 %v72, %v328
    %330 = vmatprep.mubr.f32.mxu0 0.0
    %331 = vmatmul.mubr.f32.gmra.mrb[0].mxu0 %v129
    %v332 = vpop.f32.mrb[0].mxu0
    %v333 = vadd.f32 %v68, %v332
    %v334 = vpop.f32.mrb[0].mxu0
    %v335 = vadd.f32 %v72, %v334
    %336 = vmatprep.mubr.f32.mxu0 0.0
    %337 = vmatmul.mubr.f32.gmra.mrb[0].mxu0 %v132
    %v338 = vpop.f32.mrb[0].mxu0
    %v339 = vadd.f32 %v68, %v338
    %v340 = vpop.f32.mrb[0].mxu0
    %v341 = vadd.f32 %v72, %v340
    %342 = vmatprep.mubr.f32.mxu0 0.0
    %343 = vmatmul.mubr.f32.gmra.mrb[0].mxu0 %v135
    %v344 = vpop.f32.mrb[0].mxu0
    %v345 = vadd.f32 %v68, %v344
    %v346 = vpop.f32.mrb[0].mxu0
    %v347 = vadd.f32 %v72, %v346
    %348 = vmatprep.mubr.f32.mxu0 0.0
    %349 = vmatmul.mubr.f32.gmra.mrb[0].mxu0 %v138
    %v350 = vpop.f32.mrb[0].mxu0
    %v351 = vadd.f32 %v68, %v350
    %v352 = vpop.f32.mrb[0].mxu0
    %v353 = vadd.f32 %v72, %v352
    %354 = vmatprep.mubr.f32.mxu0 0.0
    %355 = vmatmul.mubr.f32.gmra.mrb[0].mxu0 %v141
    %v356 = vpop.f32.mrb[0].mxu0
    %v357 = vadd.f32 %v68, %v356
    %v358 = vpop.f32.mrb[0].mxu0
    %v359 = vadd.f32 %v72, %v358
    %360 = vmatprep.mubr.f32.mxu0 0.0
    %361 = vmatmul.mubr.f32.gmra.mrb[0].mxu0 %v144
    %v362 = vpop.f32.mrb[0].mxu0
    %v363 = vadd.f32 %v68, %v362
    %v364 = vpop.f32.mrb[0].mxu0
    %v365 = vadd.f32 %v72, %v364
    %366 = vmatprep.mubr.f32.mxu0 0.0
    %367 = vmatmul.mubr.f32.gmra.mrb[0].mxu0 %v147
    %v368 = vpop.f32.mrb[0].mxu0
    %v369 = vadd.f32 %v68, %v368
    %v370 = vpop.f32.mrb[0].mxu0
    %v371 = vadd.f32 %v72, %v370
    %372 = vmatprep.mubr.f32.mxu0 0.0
    %373 = vmatmul.mubr.f32.gmra.mrb[0].mxu0 %v150
    %v374 = vpop.f32.mrb[0].mxu0
    %v375 = vadd.f32 %v68, %v374
    %v376 = vpop.f32.mrb[0].mxu0
    %v377 = vadd.f32 %v72, %v376
    %378 = vmatprep.mubr.f32.mxu0 0.0
    %379 = vmatmul.mubr.f32.gmra.mrb[0].mxu0 %v153
    %v380 = vpop.f32.mrb[0].mxu0
    %v381 = vadd.f32 %v68, %v380
    %v382 = vpop.f32.mrb[0].mxu0
    %v383 = vadd.f32 %v72, %v382
    %384 = vmatprep.mubr.f32.mxu0 0.0
    %385 = vmatmul.mubr.f32.gmra.mrb[0].mxu0 %v156
    %v386 = vpop.f32.mrb[0].mxu0
    %v387 = vadd.f32 %v68, %v386
    %v388 = vpop.f32.mrb[0].mxu0
    %v389 = vadd.f32 %v72, %v388
    %390 = vmatprep.mubr.f32.mxu0 0.0
    %391 = vmatmul.mubr.f32.gmra.mrb[0].mxu0 %v159
    %v392 = vpop.f32.mrb[0].mxu0
    %v393 = vadd.f32 %v68, %v392
    %v394 = vpop.f32.mrb[0].mxu0
    %v395 = vadd.f32 %v72, %v394
    %396 = vmatprep.mubr.f32.mxu0 0.0
    %397 = vmatmul.mubr.f32.gmra.mrb[0].mxu0 %v162
    %v398 = vpop.f32.mrb[0].mxu0
    %v399 = vadd.f32 %v68, %v398
    %v400 = vpop.f32.mrb[0].mxu0
    %v401 = vadd.f32 %v72, %v400
    %402 = vmatprep.mubr.f32.mxu0 0.0
    %403 = vmatmul.mubr.f32.gmra.mrb[0].mxu0 %v165
    %v404 = vpop.f32.mrb[0].mxu0
    %v405 = vadd.f32 %v68, %v404
    %v406 = vpop.f32.mrb[0].mxu0
    %v407 = vadd.f32 %v72, %v406
    %408 = vmatprep.mubr.f32.mxu0 0.0
    %409 = vmatmul.mubr.f32.gmra.mrb[0].mxu0 %v168
    %v410 = vpop.f32.mrb[0].mxu0
    %v411 = vadd.f32 %v68, %v410
    %v412 = vpop.f32.mrb[0].mxu0
    %v413 = vadd.f32 %v72, %v412
    %414 = vmatprep.mubr.f32.mxu0 0.0
    %415 = vmatmul.mubr.f32.gmra.mrb[0].mxu0 %v171
    %v416 = vpop.f32.mrb[0].mxu0
    %v417 = vadd.f32 %v68, %v416
    %v418 = vpop.f32.mrb[0].mxu0
    %v419 = vadd.f32 %v72, %v418
    %420 = vmatprep.mubr.f32.mxu0 0.0
    %421 = vmatmul.mubr.f32.gmra.mrb[0].mxu0 %v174
    %v422 = vpop.f32.mrb[0].mxu0
    %v423 = vadd.f32 %v68, %v422
    %v424 = vpop.f32.mrb[0].mxu0
    %v425 = vadd.f32 %v72, %v424
    %426 = vmatprep.mubr.f32.mxu0 0.0
    %427 = vmatmul.mubr.f32.gmra.mrb[0].mxu0 %v177
    %v428 = vpop.f32.mrb[0].mxu0
    %v429 = vadd.f32 %v68, %v428
    %v430 = vpop.f32.mrb[0].mxu0
    %v431 = vadd.f32 %v72, %v430
    %432 = vmatprep.mubr.f32.mxu0 0.0
    %433 = vmatmul.mubr.f32.gmra.mrb[0].mxu0 %v180
    %v434 = vpop.f32.mrb[0].mxu0
    %v435 = vadd.f32 %v68, %v434
    %v436 = vpop.f32.mrb[0].mxu0
    %v437 = vadd.f32 %v72, %v436
    %438 = vdwg.mxu0
    %439 = vmatprep.subr.mxu0 %v50
    %440 = vmatpush1.msra.mxu0 %v49
    %441 = vmatprep.subr.mxu0 %v54
    %442 = vmatpush1.msra.mxu0 %v53
    %443 = vmatprep.subr.mxu0 %v58
    %444 = vmatpush1.msra.mxu0 %v57
    %445 = vmatprep.subr.mxu0 %v62
    %446 = vmatpush1.msra.mxu0 %v61
    %447 = vmatprep.subr.mxu0 0.0
    %448 = vmatpush1.msra.mxu0 0.0
    %449 = vmatprep.subr.mxu0 0.0
    %450 = vmatpush1.msra.mxu0 0.0
    %451 = vmatprep.subr.mxu0 0.0
    %452 = vmatpush1.msra.mxu0 0.0
    %453 = vmatprep.subr.mxu0 0.0
    %454 = vmatpush1.msra.mxu0 0.0
    %455 = vmatprep.subr.mxu0 0.0
    %456 = vmatpush1.msra.mxu0 0.0
    %457 = vmatprep.subr.mxu0 0.0
    %458 = vmatpush1.msra.mxu0 0.0
    %459 = vmatprep.subr.mxu0 0.0
    %460 = vmatpush1.msra.mxu0 0.0
    %461 = vmatprep.subr.mxu0 0.0
    %462 = vmatpush1.msra.mxu0 0.0
    %463 = vmatprep.subr.mxu0 0.0
    %464 = vmatpush1.msra.mxu0 0.0
    %465 = vmatprep.subr.mxu0 0.0
    %466 = vmatpush1.msra.mxu0 0.0
    %467 = vmatprep.subr.mxu0 0.0
    %468 = vmatpush1.msra.mxu0 0.0
    %469 = vmatprep.subr.mxu0 0.0
    %470 = vmatpush1.msra.mxu0 0.0
    %471 = vmatprep.subr.mxu0 0.0
    %472 = vmatpush1.msra.mxu0 0.0
    %473 = vmatprep.subr.mxu0 0.0
    %474 = vmatpush1.msra.mxu0 0.0
    %475 = vmatprep.subr.mxu0 0.0
    %476 = vmatpush1.msra.mxu0 0.0
    %477 = vmatprep.subr.mxu0 0.0
    %478 = vmatpush1.msra.mxu0 0.0
    %479 = vmatprep.subr.mxu0 0.0
    %480 = vmatpush1.msra.mxu0 0.0
    %481 = vmatprep.subr.mxu0 0.0
    %482 = vmatpush1.msra.mxu0 0.0
    %483 = vmatprep.subr.mxu0 0.0
    %484 = vmatpush1.msra.mxu0 0.0
    %485 = vmatprep.subr.mxu0 0.0
    %486 = vmatpush1.msra.mxu0 0.0
    %487 = vmatprep.subr.mxu0 0.0
    %488 = vmatpush1.msra.mxu0 0.0
    %489 = vmatprep.subr.mxu0 0.0
    %490 = vmatpush1.msra.mxu0 0.0
    %491 = vmatprep.subr.mxu0 0.0
    %492 = vmatpush1.msra.mxu0 0.0
    %493 = vmatprep.subr.mxu0 0.0
    %494 = vmatpush1.msra.mxu0 0.0
    %495 = vmatprep.subr.mxu0 0.0
    %496 = vmatpush1.msra.mxu0 0.0
    %497 = vmatprep.subr.mxu0 0.0
    %498 = vmatpush1.msra.mxu0 0.0
    %499 = vmatprep.subr.mxu0 0.0
    %500 = vmatpush1.msra.mxu0 0.0
    %501 = vmatprep.subr.mxu0 0.0
    %502 = vmatpush1.msra.mxu0 0.0
    %503 = vmatprep.mubr.f32.mxu0 0.0
    %504 = vmatmul.mubr.f32.gmra.mrb[0].mxu0 %v87
    %v505 = vpop.f32.mrb[0].mxu0
    %v506 = vadd.f32 %v76, %v505
    %v507 = vpop.f32.mrb[0].mxu0
    %v508 = vadd.f32 %v80, %v507
    %509 = vmatprep.mubr.f32.mxu0 0.0
    %510 = vmatmul.mubr.f32.gmra.mrb[0].mxu0 %v90
    %v511 = vpop.f32.mrb[0].mxu0
    %v512 = vadd.f32 %v76, %v511
    %v513 = vpop.f32.mrb[0].mxu0
    %v514 = vadd.f32 %v80, %v513
    %515 = vmatprep.mubr.f32.mxu0 0.0
    %516 = vmatmul.mubr.f32.gmra.mrb[0].mxu0 %v93
    %v517 = vpop.f32.mrb[0].mxu0
    %v518 = vadd.f32 %v76, %v517
    %v519 = vpop.f32.mrb[0].mxu0
    %v520 = vadd.f32 %v80, %v519
    %521 = vmatprep.mubr.f32.mxu0 0.0
    %522 = vmatmul.mubr.f32.gmra.mrb[0].mxu0 %v96
    %v523 = vpop.f32.mrb[0].mxu0
    %v524 = vadd.f32 %v76, %v523
    %v525 = vpop.f32.mrb[0].mxu0
    %v526 = vadd.f32 %v80, %v525
    %527 = vmatprep.mubr.f32.mxu0 0.0
    %528 = vmatmul.mubr.f32.gmra.mrb[0].mxu0 %v99
    %v529 = vpop.f32.mrb[0].mxu0
    %v530 = vadd.f32 %v76, %v529
    %v531 = vpop.f32.mrb[0].mxu0
    %v532 = vadd.f32 %v80, %v531
    %533 = vmatprep.mubr.f32.mxu0 0.0
    %534 = vmatmul.mubr.f32.gmra.mrb[0].mxu0 %v102
    %v535 = vpop.f32.mrb[0].mxu0
    %v536 = vadd.f32 %v76, %v535
    %v537 = vpop.f32.mrb[0].mxu0
    %v538 = vadd.f32 %v80, %v537
    %539 = vmatprep.mubr.f32.mxu0 0.0
    %540 = vmatmul.mubr.f32.gmra.mrb[0].mxu0 %v105
    %v541 = vpop.f32.mrb[0].mxu0
    %v542 = vadd.f32 %v76, %v541
    %v543 = vpop.f32.mrb[0].mxu0
    %v544 = vadd.f32 %v80, %v543
    %545 = vmatprep.mubr.f32.mxu0 0.0
    %546 = vmatmul.mubr.f32.gmra.mrb[0].mxu0 %v108
    %v547 = vpop.f32.mrb[0].mxu0
    %v548 = vadd.f32 %v76, %v547
    %v549 = vpop.f32.mrb[0].mxu0
    %v550 = vadd.f32 %v80, %v549
    %551 = vmatprep.mubr.f32.mxu0 0.0
    %552 = vmatmul.mubr.f32.gmra.mrb[0].mxu0 %v111
    %v553 = vpop.f32.mrb[0].mxu0
    %v554 = vadd.f32 %v76, %v553
    %v555 = vpop.f32.mrb[0].mxu0
    %v556 = vadd.f32 %v80, %v555
    %557 = vmatprep.mubr.f32.mxu0 0.0
    %558 = vmatmul.mubr.f32.gmra.mrb[0].mxu0 %v114
    %v559 = vpop.f32.mrb[0].mxu0
    %v560 = vadd.f32 %v76, %v559
    %v561 = vpop.f32.mrb[0].mxu0
    %v562 = vadd.f32 %v80, %v561
    %563 = vmatprep.mubr.f32.mxu0 0.0
    %564 = vmatmul.mubr.f32.gmra.mrb[0].mxu0 %v117
    %v565 = vpop.f32.mrb[0].mxu0
    %v566 = vadd.f32 %v76, %v565
    %v567 = vpop.f32.mrb[0].mxu0
    %v568 = vadd.f32 %v80, %v567
    %569 = vmatprep.mubr.f32.mxu0 0.0
    %570 = vmatmul.mubr.f32.gmra.mrb[0].mxu0 %v120
    %v571 = vpop.f32.mrb[0].mxu0
    %v572 = vadd.f32 %v76, %v571
    %v573 = vpop.f32.mrb[0].mxu0
    %v574 = vadd.f32 %v80, %v573
    %575 = vmatprep.mubr.f32.mxu0 0.0
    %576 = vmatmul.mubr.f32.gmra.mrb[0].mxu0 %v123
    %v577 = vpop.f32.mrb[0].mxu0
    %v578 = vadd.f32 %v76, %v577
    %v579 = vpop.f32.mrb[0].mxu0
    %v580 = vadd.f32 %v80, %v579
    %581 = vmatprep.mubr.f32.mxu0 0.0
    %582 = vmatmul.mubr.f32.gmra.mrb[0].mxu0 %v126
    %v583 = vpop.f32.mrb[0].mxu0
    %v584 = vadd.f32 %v76, %v583
    %v585 = vpop.f32.mrb[0].mxu0
    %v586 = vadd.f32 %v80, %v585
    %587 = vmatprep.mubr.f32.mxu0 0.0
    %588 = vmatmul.mubr.f32.gmra.mrb[0].mxu0 %v129
    %v589 = vpop.f32.mrb[0].mxu0
    %v590 = vadd.f32 %v76, %v589
    %v591 = vpop.f32.mrb[0].mxu0
    %v592 = vadd.f32 %v80, %v591
    %593 = vmatprep.mubr.f32.mxu0 0.0
    %594 = vmatmul.mubr.f32.gmra.mrb[0].mxu0 %v132
    %v595 = vpop.f32.mrb[0].mxu0
    %v596 = vadd.f32 %v76, %v595
    %v597 = vpop.f32.mrb[0].mxu0
    %v598 = vadd.f32 %v80, %v597
    %599 = vmatprep.mubr.f32.mxu0 0.0
    %600 = vmatmul.mubr.f32.gmra.mrb[0].mxu0 %v135
    %v601 = vpop.f32.mrb[0].mxu0
    %v602 = vadd.f32 %v76, %v601
    %v603 = vpop.f32.mrb[0].mxu0
    %v604 = vadd.f32 %v80, %v603
    %605 = vmatprep.mubr.f32.mxu0 0.0
    %606 = vmatmul.mubr.f32.gmra.mrb[0].mxu0 %v138
    %v607 = vpop.f32.mrb[0].mxu0
    %v608 = vadd.f32 %v76, %v607
    %v609 = vpop.f32.mrb[0].mxu0
    %v610 = vadd.f32 %v80, %v609
    %611 = vmatprep.mubr.f32.mxu0 0.0
    %612 = vmatmul.mubr.f32.gmra.mrb[0].mxu0 %v141
    %v613 = vpop.f32.mrb[0].mxu0
    %v614 = vadd.f32 %v76, %v613
    %v615 = vpop.f32.mrb[0].mxu0
    %v616 = vadd.f32 %v80, %v615
    %617 = vmatprep.mubr.f32.mxu0 0.0
    %618 = vmatmul.mubr.f32.gmra.mrb[0].mxu0 %v144
    %v619 = vpop.f32.mrb[0].mxu0
    %v620 = vadd.f32 %v76, %v619
    %v621 = vpop.f32.mrb[0].mxu0
    %v622 = vadd.f32 %v80, %v621
    %623 = vmatprep.mubr.f32.mxu0 0.0
    %624 = vmatmul.mubr.f32.gmra.mrb[0].mxu0 %v147
    %v625 = vpop.f32.mrb[0].mxu0
    %v626 = vadd.f32 %v76, %v625
    %v627 = vpop.f32.mrb[0].mxu0
    %v628 = vadd.f32 %v80, %v627
    %629 = vmatprep.mubr.f32.mxu0 0.0
    %630 = vmatmul.mubr.f32.gmra.mrb[0].mxu0 %v150
    %v631 = vpop.f32.mrb[0].mxu0
    %v632 = vadd.f32 %v76, %v631
    %v633 = vpop.f32.mrb[0].mxu0
    %v634 = vadd.f32 %v80, %v633
    %635 = vmatprep.mubr.f32.mxu0 0.0
    %636 = vmatmul.mubr.f32.gmra.mrb[0].mxu0 %v153
    %v637 = vpop.f32.mrb[0].mxu0
    %v638 = vadd.f32 %v76, %v637
    %v639 = vpop.f32.mrb[0].mxu0
    %v640 = vadd.f32 %v80, %v639
    %641 = vmatprep.mubr.f32.mxu0 0.0
    %642 = vmatmul.mubr.f32.gmra.mrb[0].mxu0 %v156
    %v643 = vpop.f32.mrb[0].mxu0
    %v644 = vadd.f32 %v76, %v643
    %v645 = vpop.f32.mrb[0].mxu0
    %v646 = vadd.f32 %v80, %v645
    %647 = vmatprep.mubr.f32.mxu0 0.0
    %648 = vmatmul.mubr.f32.gmra.mrb[0].mxu0 %v159
    %v649 = vpop.f32.mrb[0].mxu0
    %v650 = vadd.f32 %v76, %v649
    %v651 = vpop.f32.mrb[0].mxu0
    %v652 = vadd.f32 %v80, %v651
    %653 = vmatprep.mubr.f32.mxu0 0.0
    %654 = vmatmul.mubr.f32.gmra.mrb[0].mxu0 %v162
    %v655 = vpop.f32.mrb[0].mxu0
    %v656 = vadd.f32 %v76, %v655
    %v657 = vpop.f32.mrb[0].mxu0
    %v658 = vadd.f32 %v80, %v657
    %659 = vmatprep.mubr.f32.mxu0 0.0
    %660 = vmatmul.mubr.f32.gmra.mrb[0].mxu0 %v165
    %v661 = vpop.f32.mrb[0].mxu0
    %v662 = vadd.f32 %v76, %v661
    %v663 = vpop.f32.mrb[0].mxu0
    %v664 = vadd.f32 %v80, %v663
    %665 = vmatprep.mubr.f32.mxu0 0.0
    %666 = vmatmul.mubr.f32.gmra.mrb[0].mxu0 %v168
    %v667 = vpop.f32.mrb[0].mxu0
    %v668 = vadd.f32 %v76, %v667
    %v669 = vpop.f32.mrb[0].mxu0
    %v670 = vadd.f32 %v80, %v669
    %671 = vmatprep.mubr.f32.mxu0 0.0
    %672 = vmatmul.mubr.f32.gmra.mrb[0].mxu0 %v171
    %v673 = vpop.f32.mrb[0].mxu0
    %v674 = vadd.f32 %v76, %v673
    %v675 = vpop.f32.mrb[0].mxu0
    %v676 = vadd.f32 %v80, %v675
    %677 = vmatprep.mubr.f32.mxu0 0.0
    %678 = vmatmul.mubr.f32.gmra.mrb[0].mxu0 %v174
    %v679 = vpop.f32.mrb[0].mxu0
    %v680 = vadd.f32 %v76, %v679
    %v681 = vpop.f32.mrb[0].mxu0
    %v682 = vadd.f32 %v80, %v681
    %683 = vmatprep.mubr.f32.mxu0 0.0
    %684 = vmatmul.mubr.f32.gmra.mrb[0].mxu0 %v177
    %v685 = vpop.f32.mrb[0].mxu0
    %v686 = vadd.f32 %v76, %v685
    %v687 = vpop.f32.mrb[0].mxu0
    %v688 = vadd.f32 %v80, %v687
    %689 = vmatprep.mubr.f32.mxu0 0.0
    %690 = vmatmul.mubr.f32.gmra.mrb[0].mxu0 %v180
    %v691 = vpop.f32.mrb[0].mxu0
    %v692 = vadd.f32 %v76, %v691
    %v693 = vpop.f32.mrb[0].mxu0
    %v694 = vadd.f32 %v80, %v693
    %695 = vdwg.mxu0
    %696 = vst [vmem:[#allocation2] sm:$0xff] %v249
    %697 = vst [vmem:[#allocation2 + $0x8] sm:$0xff] %v251
    %698 = vst [vmem:[#allocation2 + $0x10] sm:$0xff] %v506
    %699 = vst [vmem:[#allocation2 + $0x18] sm:$0xff] %v508
    %700 = vst [vmem:[#allocation2 + $0x20] sm:$0xff] %v255
    %701 = vst [vmem:[#allocation2 + $0x28] sm:$0xff] %v257
    %702 = vst [vmem:[#allocation2 + $0x30] sm:$0xff] %v512
    %703 = vst [vmem:[#allocation2 + $0x38] sm:$0xff] %v514
    %704 = vst [vmem:[#allocation2 + $0x40] sm:$0xff] %v261
    %705 = vst [vmem:[#allocation2 + $0x48] sm:$0xff] %v263
    %706 = vst [vmem:[#allocation2 + $0x50] sm:$0xff] %v518
    %707 = vst [vmem:[#allocation2 + $0x58] sm:$0xff] %v520
    %708 = vst [vmem:[#allocation2 + $0x60] sm:$0xff] %v267
    %709 = vst [vmem:[#allocation2 + $0x68] sm:$0xff] %v269
    %710 = vst [vmem:[#allocation2 + $0x70] sm:$0xff] %v524
    %711 = vst [vmem:[#allocation2 + $0x78] sm:$0xff] %v526
    %712 = vst [vmem:[#allocation2 + $0x80] sm:$0xff] %v273
    %713 = vst [vmem:[#allocation2 + $0x88] sm:$0xff] %v275
    %714 = vst [vmem:[#allocation2 + $0x90] sm:$0xff] %v530
    %715 = vst [vmem:[#allocation2 + $0x98] sm:$0xff] %v532
    %716 = vst [vmem:[#allocation2 + $0xa0] sm:$0xff] %v279
    %717 = vst [vmem:[#allocation2 + $0xa8] sm:$0xff] %v281
    %718 = vst [vmem:[#allocation2 + $0xb0] sm:$0xff] %v536
    %719 = vst [vmem:[#allocation2 + $0xb8] sm:$0xff] %v538
    %720 = vst [vmem:[#allocation2 + $0xc0] sm:$0xff] %v285
    %721 = vst [vmem:[#allocation2 + $0xc8] sm:$0xff] %v287
    %722 = vst [vmem:[#allocation2 + $0xd0] sm:$0xff] %v542
    %723 = vst [vmem:[#allocation2 + $0xd8] sm:$0xff] %v544
    %724 = vst [vmem:[#allocation2 + $0xe0] sm:$0xff] %v291
    %725 = vst [vmem:[#allocation2 + $0xe8] sm:$0xff] %v293
    %726 = vst [vmem:[#allocation2 + $0xf0] sm:$0xff] %v548
    %727 = vst [vmem:[#allocation2 + $0xf8] sm:$0xff] %v550
    %728 = vst [vmem:[#allocation2 + $0x100] sm:$0xff] %v297
    %729 = vst [vmem:[#allocation2 + $0x108] sm:$0xff] %v299
    %730 = vst [vmem:[#allocation2 + $0x110] sm:$0xff] %v554
    %731 = vst [vmem:[#allocation2 + $0x118] sm:$0xff] %v556
    %732 = vst [vmem:[#allocation2 + $0x120] sm:$0xff] %v303
    %733 = vst [vmem:[#allocation2 + $0x128] sm:$0xff] %v305
    %734 = vst [vmem:[#allocation2 + $0x130] sm:$0xff] %v560
    %735 = vst [vmem:[#allocation2 + $0x138] sm:$0xff] %v562
    %736 = vst [vmem:[#allocation2 + $0x140] sm:$0xff] %v309
    %737 = vst [vmem:[#allocation2 + $0x148] sm:$0xff] %v311
    %738 = vst [vmem:[#allocation2 + $0x150] sm:$0xff] %v566
    %739 = vst [vmem:[#allocation2 + $0x158] sm:$0xff] %v568
    %740 = vst [vmem:[#allocation2 + $0x160] sm:$0xff] %v315
    %741 = vst [vmem:[#allocation2 + $0x168] sm:$0xff] %v317
    %742 = vst [vmem:[#allocation2 + $0x170] sm:$0xff] %v572
    %743 = vst [vmem:[#allocation2 + $0x178] sm:$0xff] %v574
    %744 = vst [vmem:[#allocation2 + $0x180] sm:$0xff] %v321
    %745 = vst [vmem:[#allocation2 + $0x188] sm:$0xff] %v323
    %746 = vst [vmem:[#allocation2 + $0x190] sm:$0xff] %v578
    %747 = vst [vmem:[#allocation2 + $0x198] sm:$0xff] %v580
    %748 = vst [vmem:[#allocation2 + $0x1a0] sm:$0xff] %v327
    %749 = vst [vmem:[#allocation2 + $0x1a8] sm:$0xff] %v329
    %750 = vst [vmem:[#allocation2 + $0x1b0] sm:$0xff] %v584
    %751 = vst [vmem:[#allocation2 + $0x1b8] sm:$0xff] %v586
    %752 = vst [vmem:[#allocation2 + $0x1c0] sm:$0xff] %v333
    %753 = vst [vmem:[#allocation2 + $0x1c8] sm:$0xff] %v335
    %754 = vst [vmem:[#allocation2 + $0x1d0] sm:$0xff] %v590
    %755 = vst [vmem:[#allocation2 + $0x1d8] sm:$0xff] %v592
    %756 = vst [vmem:[#allocation2 + $0x1e0] sm:$0xff] %v339
    %757 = vst [vmem:[#allocation2 + $0x1e8] sm:$0xff] %v341
    %758 = vst [vmem:[#allocation2 + $0x1f0] sm:$0xff] %v596
    %759 = vst [vmem:[#allocation2 + $0x1f8] sm:$0xff] %v598
    %760 = vst [vmem:[#allocation2 + $0x200] sm:$0xff] %v345
    %761 = vst [vmem:[#allocation2 + $0x208] sm:$0xff] %v347
    %762 = vst [vmem:[#allocation2 + $0x210] sm:$0xff] %v602
    %763 = vst [vmem:[#allocation2 + $0x218] sm:$0xff] %v604
    %764 = vst [vmem:[#allocation2 + $0x220] sm:$0xff] %v351
    %765 = vst [vmem:[#allocation2 + $0x228] sm:$0xff] %v353
    %766 = vst [vmem:[#allocation2 + $0x230] sm:$0xff] %v608
    %767 = vst [vmem:[#allocation2 + $0x238] sm:$0xff] %v610
    %768 = vst [vmem:[#allocation2 + $0x240] sm:$0xff] %v357
    %769 = vst [vmem:[#allocation2 + $0x248] sm:$0xff] %v359
    %770 = vst [vmem:[#allocation2 + $0x250] sm:$0xff] %v614
    %771 = vst [vmem:[#allocation2 + $0x258] sm:$0xff] %v616
    %772 = vst [vmem:[#allocation2 + $0x260] sm:$0xff] %v363
    %773 = vst [vmem:[#allocation2 + $0x268] sm:$0xff] %v365
    %774 = vst [vmem:[#allocation2 + $0x270] sm:$0xff] %v620
    %775 = vst [vmem:[#allocation2 + $0x278] sm:$0xff] %v622
    %776 = vst [vmem:[#allocation2 + $0x280] sm:$0xff] %v369
    %777 = vst [vmem:[#allocation2 + $0x288] sm:$0xff] %v371
    %778 = vst [vmem:[#allocation2 + $0x290] sm:$0xff] %v626
    %779 = vst [vmem:[#allocation2 + $0x298] sm:$0xff] %v628
    %780 = vst [vmem:[#allocation2 + $0x2a0] sm:$0xff] %v375
    %781 = vst [vmem:[#allocation2 + $0x2a8] sm:$0xff] %v377
    %782 = vst [vmem:[#allocation2 + $0x2b0] sm:$0xff] %v632
    %783 = vst [vmem:[#allocation2 + $0x2b8] sm:$0xff] %v634
    %784 = vst [vmem:[#allocation2 + $0x2c0] sm:$0xff] %v381
    %785 = vst [vmem:[#allocation2 + $0x2c8] sm:$0xff] %v383
    %786 = vst [vmem:[#allocation2 + $0x2d0] sm:$0xff] %v638
    %787 = vst [vmem:[#allocation2 + $0x2d8] sm:$0xff] %v640
    %788 = vst [vmem:[#allocation2 + $0x2e0] sm:$0xff] %v387
    %789 = vst [vmem:[#allocation2 + $0x2e8] sm:$0xff] %v389
    %790 = vst [vmem:[#allocation2 + $0x2f0] sm:$0xff] %v644
    %791 = vst [vmem:[#allocation2 + $0x2f8] sm:$0xff] %v646
    %792 = vst [vmem:[#allocation2 + $0x300] sm:$0xff] %v393
    %793 = vst [vmem:[#allocation2 + $0x308] sm:$0xff] %v395
    %794 = vst [vmem:[#allocation2 + $0x310] sm:$0xff] %v650
    %795 = vst [vmem:[#allocation2 + $0x318] sm:$0xff] %v652
    %796 = vst [vmem:[#allocation2 + $0x320] sm:$0xff] %v399
    %797 = vst [vmem:[#allocation2 + $0x328] sm:$0xff] %v401
    %798 = vst [vmem:[#allocation2 + $0x330] sm:$0xff] %v656
    %799 = vst [vmem:[#allocation2 + $0x338] sm:$0xff] %v658
    %800 = vst [vmem:[#allocation2 + $0x340] sm:$0xff] %v405
    %801 = vst [vmem:[#allocation2 + $0x348] sm:$0xff] %v407
    %802 = vst [vmem:[#allocation2 + $0x350] sm:$0xff] %v662
    %803 = vst [vmem:[#allocation2 + $0x358] sm:$0xff] %v664
    %804 = vst [vmem:[#allocation2 + $0x360] sm:$0xff] %v411
    %805 = vst [vmem:[#allocation2 + $0x368] sm:$0xff] %v413
    %806 = vst [vmem:[#allocation2 + $0x370] sm:$0xff] %v668
    %807 = vst [vmem:[#allocation2 + $0x378] sm:$0xff] %v670
    %808 = vst [vmem:[#allocation2 + $0x380] sm:$0xff] %v417
    %809 = vst [vmem:[#allocation2 + $0x388] sm:$0xff] %v419
    %810 = vst [vmem:[#allocation2 + $0x390] sm:$0xff] %v674
    %811 = vst [vmem:[#allocation2 + $0x398] sm:$0xff] %v676
    %812 = vst [vmem:[#allocation2 + $0x3a0] sm:$0xff] %v423
    %813 = vst [vmem:[#allocation2 + $0x3a8] sm:$0xff] %v425
    %814 = vst [vmem:[#allocation2 + $0x3b0] sm:$0xff] %v680
    %815 = vst [vmem:[#allocation2 + $0x3b8] sm:$0xff] %v682
    %816 = vst [vmem:[#allocation2 + $0x3c0] sm:$0xff] %v429
    %817 = vst [vmem:[#allocation2 + $0x3c8] sm:$0xff] %v431
    %818 = vst [vmem:[#allocation2 + $0x3d0] sm:$0xff] %v686
    %819 = vst [vmem:[#allocation2 + $0x3d8] sm:$0xff] %v688
    %820 = vst [vmem:[#allocation2 + $0x3e0] sm:$0xff] %v435
    %821 = vst [vmem:[#allocation2 + $0x3e8] sm:$0xff] %v437
    %822 = vst [vmem:[#allocation2 + $0x3f0] sm:$0xff] %v692
    %823 = vst [vmem:[#allocation2 + $0x3f8] sm:$0xff] %v694
    // Predicated region
    $region14: #{tpu_custom_call.1} parent=1 // pred_check
      _
    $region15: #{tpu_custom_call.1} parent=1 // pred_check_branch
      %825 = sbr.rel (0) target = $region17
    $region16: #{tpu_custom_call.1} parent=1 // pred_region
      %s827 = ssub.s32 16384, 16384
      %828 = vsyncadd [#allocation3], %s827
      %s829 = sshll.u32 [#allocation2], 4
      %s830 = int_to_ptr.vmem [resolvable:$true] %s829
      %835 = dma.vmem_to_hbm [thread:$0]  %s830, 16384, %s3, [#allocation3], 512, 512, 32
    $region17: #{tpu_custom_call.1} parent=1 // pred_fallthru
      _
    // Predicated region
    $region18: #{tpu_custom_call.1} parent=1 // pred_check
      _
    $region19: #{tpu_custom_call.1} parent=1 // pred_check_branch
      %837 = sbr.rel (0) target = $region21
    $region20: #{tpu_custom_call.1} parent=1 // pred_region
      %838 = dma.done [#allocation3], 16384
    $region21: #{tpu_custom_call.1} parent=1 // pred_fallthru
      _
    %839 = vsyncpa [#allocation3], 1

</llo_original>
